<compile_context>
chip_gen: v5e
topology: v5e:2x2
jax: 0.10.0
libtpu: 0.0.40
codegen_flags: <defaults>
</compile_context>

<pallas_src>
import functools

import jax
import jax.numpy as jnp
from jax import lax
from jax.experimental import pallas as pl
from jax.experimental.pallas import tpu as pltpu  # noqa: F401  (TPU backend)


def _lora_snn_kernel(x_ref, w1_ref, b1_ref, w2_ref, b2_ref,
                     spk_out_ref, mem_out_ref,
                     *, beta, threshold, num_steps):
    x = x_ref[...]
    w2 = w2_ref[...]
    b2 = b2_ref[...]

    # Layer-1 current is loop-invariant (x is constant over time): compute it
    # exactly once per forward pass instead of once per step.
    cur1 = (jnp.dot(x, w1_ref[...], preferred_element_type=jnp.float32)
            + b1_ref[...])

    B = x.shape[0]
    H = w1_ref.shape[1]
    O = w2_ref.shape[1]

    def lif(cur, mem):
        # snnTorch Leaky, subtract-reset (reset computed from *previous* mem).
        # Strict '>' — the mem == threshold edge case is measure-zero.
        reset = (mem > threshold).astype(jnp.float32)
        mem = beta * mem + cur - reset * threshold
        spk = (mem > threshold).astype(jnp.float32)
        return spk, mem

    def step(t, carry):
        mem1, mem2 = carry
        spk1, mem1 = lif(cur1, mem1)
        cur2 = (jnp.dot(spk1, w2, preferred_element_type=jnp.float32) + b2)
        spk2, mem2 = lif(cur2, mem2)
        # Record this step into the resident VMEM output slabs; the HBM
        # writeback happens once, at kernel exit.
        spk_out_ref[t] = spk2
        mem_out_ref[t] = mem2
        return (mem1, mem2)

    mem1_0 = jnp.zeros((B, H), jnp.float32)   # lif1.init_leaky()
    mem2_0 = jnp.zeros((B, O), jnp.float32)   # lif2.init_leaky()
    # Fully unrolled: short static trip count, membrane state stays in vregs.
    lax.fori_loop(0, num_steps, step, (mem1_0, mem2_0), unroll=True)


def lora_snn_forward(x, params, *, alpha, beta, num_steps, threshold=1.0):
    """LoRA_SNN forward pass. Returns (spk2_rec, mem2_rec), each of shape
    (num_steps, batch, num_outputs)."""
    w1, b1, la1, lb1, w2, b2, la2, lb2 = params

    # Fold the LoRA adapters into the frozen weights once, outside the kernel:
    #   fc(x) + alpha * (x @ A) @ B == x @ (W + alpha * A @ B) + b
    w1_eff = w1 + alpha * (la1 @ lb1)
    w2_eff = w2 + alpha * (la2 @ lb2)

    B = x.shape[0]
    O = w2.shape[1]

    kernel = functools.partial(
        _lora_snn_kernel,
        beta=float(beta), threshold=float(threshold), num_steps=int(num_steps))

    out_shapes = (
        jax.ShapeDtypeStruct((num_steps, B, O), jnp.float32),
        jax.ShapeDtypeStruct((num_steps, B, O), jnp.float32),
    )

    # No grid: single kernel invocation; default BlockSpecs stage every operand
    # (whole array) into VMEM and write each output back with one DMA.
    return pl.pallas_call(
        kernel,
        out_shape=out_shapes,
    )(x, w1_eff, b1, w2_eff, b2)


def lora_snn_reference(x, params, *, alpha, beta, num_steps, threshold=1.0):
    """Pure-JAX reference (per-step LIF recurrence on the LoRA-folded weights;
    the fold is algebraically identical to fc(x) + alpha*(x@A)@B)."""
    w1, b1, la1, lb1, w2, b2, la2, lb2 = params
    w1_eff = w1 + alpha * (la1 @ lb1)
    w2_eff = w2 + alpha * (la2 @ lb2)

    B = x.shape[0]
    mem1 = jnp.zeros((B, w1.shape[1]), jnp.float32)
    mem2 = jnp.zeros((B, w2.shape[1]), jnp.float32)

    def lif(cur, mem):
        reset = (mem > threshold).astype(jnp.float32)
        mem = beta * mem + cur - reset * threshold
        spk = (mem > threshold).astype(jnp.float32)
        return spk, mem

    def step(carry, _):
        mem1, mem2 = carry
        cur1 = x @ w1_eff + b1
        spk1, mem1 = lif(cur1, mem1)
        cur2 = spk1 @ w2_eff + b2
        spk2, mem2 = lif(cur2, mem2)
        return (mem1, mem2), (spk2, mem2)

    (_, _), (spk_rec, mem_rec) = jax.lax.scan(
        step, (mem1, mem2), xs=None, length=num_steps)
    return spk_rec, mem_rec


if __name__ == "__main__":
    # Small, module-consistent shapes.
    batch = 8
    num_inputs = 32
    num_hidden = 32
    num_outputs = 16
    lora_rank = 4
    num_steps = 25          # module default
    beta = 0.9
    alpha = 2.0

    key = jax.random.PRNGKey(0)
    ks = jax.random.split(key, 10)

    def unif(k, shape, fan_in):
        bound = 1.0 / jnp.sqrt(fan_in)
        return jax.random.uniform(k, shape, jnp.float32, -bound, bound)

    # Frozen fc weights, stored as (in, out) = PyTorch weight transposed.
    # TODO(synk): real use loads these from a torch checkpoint (path); here
    # they are synthesized deterministically in-script.
    w1 = unif(ks[0], (num_inputs, num_hidden), num_inputs)
    b1 = unif(ks[1], (1, num_hidden), num_inputs)
    w2 = unif(ks[2], (num_hidden, num_outputs), num_hidden)
    b2 = unif(ks[3], (1, num_outputs), num_hidden)
    # LoRA adapters: A ~ kaiming-uniform(a=sqrt(5)).  The module zero-inits B;
    # use small random values so the LoRA path actually contributes here.
    la1 = unif(ks[4], (num_inputs, lora_rank), num_inputs)
    la2 = unif(ks[5], (num_hidden, lora_rank), num_hidden)
    lb1 = 0.1 * unif(ks[6], (lora_rank, num_hidden), lora_rank)
    lb2 = 0.1 * unif(ks[7], (lora_rank, num_outputs), lora_rank)

    x = jax.random.uniform(ks[8], (batch, num_inputs), jnp.float32)

    params = (w1, b1, la1, lb1, w2, b2, la2, lb2)

    spk_rec, mem_rec = lora_snn_forward(
        x, params, alpha=alpha, beta=beta, num_steps=num_steps)
    jax.block_until_ready((spk_rec, mem_rec))

    spk_ref, mem_ref = lora_snn_reference(
        x, params, alpha=alpha, beta=beta, num_steps=num_steps)

    assert spk_rec.shape == (num_steps, batch, num_outputs)
    assert mem_rec.shape == (num_steps, batch, num_outputs)
    assert jnp.allclose(spk_rec, spk_ref, atol=1e-5), "spike record mismatch"
    assert jnp.allclose(mem_rec, mem_ref, atol=1e-4), "membrane record mismatch"

    print("KERNEL_OK")
</pallas_src>

<mosaic_0001>
module attributes {stable_mosaic.version = 11 : i64} {
  func.func @_lora_snn_kernel(%arg0: memref<8x32xf32, #tpu.memory_space<vmem>>, %arg1: memref<32x32xf32, #tpu.memory_space<vmem>>, %arg2: memref<1x32xf32, #tpu.memory_space<vmem>>, %arg3: memref<32x16xf32, #tpu.memory_space<vmem>>, %arg4: memref<1x16xf32, #tpu.memory_space<vmem>>, %arg5: memref<25x8x16xf32, #tpu.memory_space<vmem>>, %arg6: memref<25x8x16xf32, #tpu.memory_space<vmem>>) attributes {dimension_semantics = [], scalar_prefetch = 0 : i64, scratch_operands = 0 : i64, tpu.core_type = #tpu.core_type<tc>} {
    %c0 = arith.constant 0 : index
    %c0_0 = arith.constant 0 : index
    %0 = vector.load %arg0[%c0, %c0_0] : memref<8x32xf32, #tpu.memory_space<vmem>>, vector<8x32xf32>
    %c0_1 = arith.constant 0 : index
    %c0_2 = arith.constant 0 : index
    %1 = vector.load %arg3[%c0_1, %c0_2] : memref<32x16xf32, #tpu.memory_space<vmem>>, vector<32x16xf32>
    %c0_3 = arith.constant 0 : index
    %c0_4 = arith.constant 0 : index
    %2 = vector.load %arg4[%c0_3, %c0_4] : memref<1x16xf32, #tpu.memory_space<vmem>>, vector<1x16xf32>
    %c0_5 = arith.constant 0 : index
    %c0_6 = arith.constant 0 : index
    %3 = vector.load %arg1[%c0_5, %c0_6] : memref<32x32xf32, #tpu.memory_space<vmem>>, vector<32x32xf32>
    %cst = arith.constant dense<0.000000e+00> : vector<8x32xf32>
    %4 = tpu.matmul %0, %3, %cst {dimension_numbers = #tpu.dot_dimension_numbers<[1], [0], [0], [1], [0, 0, 1, 1], [], []>} : vector<8x32xf32>, vector<32x32xf32>, vector<8x32xf32> -> vector<8x32xf32>
    %c0_7 = arith.constant 0 : index
    %c0_8 = arith.constant 0 : index
    %5 = vector.load %arg2[%c0_7, %c0_8] : memref<1x32xf32, #tpu.memory_space<vmem>>, vector<1x32xf32>
    %6 = vector.broadcast %5 : vector<1x32xf32> to vector<8x32xf32>
    %7 = arith.addf %4, %6 : vector<8x32xf32>
    %cst_9 = arith.constant 0.000000e+00 : f32
    %8 = vector.broadcast %cst_9 : f32 to vector<8x32xf32>
    %cst_10 = arith.constant 0.000000e+00 : f32
    %9 = vector.broadcast %cst_10 : f32 to vector<8x16xf32>
    %c0_i32 = arith.constant 0 : i32
    %cst_11 = arith.constant 1.000000e+00 : f32
    %10 = vector.broadcast %cst_11 : f32 to vector<8x32xf32>
    %11 = arith.cmpf ogt, %8, %10 : vector<8x32xf32>
    %12 = arith.extui %11 : vector<8x32xi1> to vector<8x32xi32>
    %13 = arith.sitofp %12 : vector<8x32xi32> to vector<8x32xf32>
    %cst_12 = arith.constant 0.899999976 : f32
    %14 = vector.broadcast %cst_12 : f32 to vector<8x32xf32>
    %15 = arith.mulf %14, %8 : vector<8x32xf32>
    %16 = arith.addf %15, %7 : vector<8x32xf32>
    %cst_13 = arith.constant 1.000000e+00 : f32
    %17 = vector.broadcast %cst_13 : f32 to vector<8x32xf32>
    %18 = arith.mulf %13, %17 : vector<8x32xf32>
    %19 = arith.subf %16, %18 : vector<8x32xf32>
    %cst_14 = arith.constant 1.000000e+00 : f32
    %20 = vector.broadcast %cst_14 : f32 to vector<8x32xf32>
    %21 = arith.cmpf ogt, %19, %20 : vector<8x32xf32>
    %22 = arith.extui %21 : vector<8x32xi1> to vector<8x32xi32>
    %23 = arith.sitofp %22 : vector<8x32xi32> to vector<8x32xf32>
    %cst_15 = arith.constant dense<0.000000e+00> : vector<8x16xf32>
    %24 = tpu.matmul %23, %1, %cst_15 {dimension_numbers = #tpu.dot_dimension_numbers<[1], [0], [0], [1], [0, 0, 1, 1], [], []>} : vector<8x32xf32>, vector<32x16xf32>, vector<8x16xf32> -> vector<8x16xf32>
    %25 = vector.broadcast %2 : vector<1x16xf32> to vector<8x16xf32>
    %26 = arith.addf %24, %25 : vector<8x16xf32>
    %cst_16 = arith.constant 1.000000e+00 : f32
    %27 = vector.broadcast %cst_16 : f32 to vector<8x16xf32>
    %28 = arith.cmpf ogt, %9, %27 : vector<8x16xf32>
    %29 = arith.extui %28 : vector<8x16xi1> to vector<8x16xi32>
    %30 = arith.sitofp %29 : vector<8x16xi32> to vector<8x16xf32>
    %cst_17 = arith.constant 0.899999976 : f32
    %31 = vector.broadcast %cst_17 : f32 to vector<8x16xf32>
    %32 = arith.mulf %31, %9 : vector<8x16xf32>
    %33 = arith.addf %32, %26 : vector<8x16xf32>
    %cst_18 = arith.constant 1.000000e+00 : f32
    %34 = vector.broadcast %cst_18 : f32 to vector<8x16xf32>
    %35 = arith.mulf %30, %34 : vector<8x16xf32>
    %36 = arith.subf %33, %35 : vector<8x16xf32>
    %cst_19 = arith.constant 1.000000e+00 : f32
    %37 = vector.broadcast %cst_19 : f32 to vector<8x16xf32>
    %38 = arith.cmpf ogt, %36, %37 : vector<8x16xf32>
    %39 = arith.extui %38 : vector<8x16xi1> to vector<8x16xi32>
    %40 = arith.sitofp %39 : vector<8x16xi32> to vector<8x16xf32>
    %41 = arith.index_cast %c0_i32 : i32 to index
    %c0_20 = arith.constant 0 : index
    %c0_21 = arith.constant 0 : index
    %42 = vector.load %arg5[%41, %c0_20, %c0_21] : memref<25x8x16xf32, #tpu.memory_space<vmem>>, vector<1x8x16xf32>
    %43 = vector.shape_cast %42 : vector<1x8x16xf32> to vector<8x16xf32>
    %44 = vector.shape_cast %40 : vector<8x16xf32> to vector<1x8x16xf32>
    tpu.vector_store %arg5[%41, %c0_20, %c0_21], %44 {strides = array<i32>} : memref<25x8x16xf32, #tpu.memory_space<vmem>>, vector<1x8x16xf32>,
    %45 = arith.index_cast %c0_i32 : i32 to index
    %c0_22 = arith.constant 0 : index
    %c0_23 = arith.constant 0 : index
    %46 = vector.load %arg6[%45, %c0_22, %c0_23] : memref<25x8x16xf32, #tpu.memory_space<vmem>>, vector<1x8x16xf32>
    %47 = vector.shape_cast %46 : vector<1x8x16xf32> to vector<8x16xf32>
    %48 = vector.shape_cast %36 : vector<8x16xf32> to vector<1x8x16xf32>
    tpu.vector_store %arg6[%45, %c0_22, %c0_23], %48 {strides = array<i32>} : memref<25x8x16xf32, #tpu.memory_space<vmem>>, vector<1x8x16xf32>,
    %c1_i32 = arith.constant 1 : i32
    %cst_24 = arith.constant 1.000000e+00 : f32
    %49 = vector.broadcast %cst_24 : f32 to vector<8x32xf32>
    %50 = arith.cmpf ogt, %19, %49 : vector<8x32xf32>
    %51 = arith.extui %50 : vector<8x32xi1> to vector<8x32xi32>
    %52 = arith.sitofp %51 : vector<8x32xi32> to vector<8x32xf32>
    %cst_25 = arith.constant 0.899999976 : f32
    %53 = vector.broadcast %cst_25 : f32 to vector<8x32xf32>
    %54 = arith.mulf %53, %19 : vector<8x32xf32>
    %55 = arith.addf %54, %7 : vector<8x32xf32>
    %cst_26 = arith.constant 1.000000e+00 : f32
    %56 = vector.broadcast %cst_26 : f32 to vector<8x32xf32>
    %57 = arith.mulf %52, %56 : vector<8x32xf32>
    %58 = arith.subf %55, %57 : vector<8x32xf32>
    %cst_27 = arith.constant 1.000000e+00 : f32
    %59 = vector.broadcast %cst_27 : f32 to vector<8x32xf32>
    %60 = arith.cmpf ogt, %58, %59 : vector<8x32xf32>
    %61 = arith.extui %60 : vector<8x32xi1> to vector<8x32xi32>
    %62 = arith.sitofp %61 : vector<8x32xi32> to vector<8x32xf32>
    %cst_28 = arith.constant dense<0.000000e+00> : vector<8x16xf32>
    %63 = tpu.matmul %62, %1, %cst_28 {dimension_numbers = #tpu.dot_dimension_numbers<[1], [0], [0], [1], [0, 0, 1, 1], [], []>} : vector<8x32xf32>, vector<32x16xf32>, vector<8x16xf32> -> vector<8x16xf32>
    %64 = vector.broadcast %2 : vector<1x16xf32> to vector<8x16xf32>
    %65 = arith.addf %63, %64 : vector<8x16xf32>
    %cst_29 = arith.constant 1.000000e+00 : f32
    %66 = vector.broadcast %cst_29 : f32 to vector<8x16xf32>
    %67 = arith.cmpf ogt, %36, %66 : vector<8x16xf32>
    %68 = arith.extui %67 : vector<8x16xi1> to vector<8x16xi32>
    %69 = arith.sitofp %68 : vector<8x16xi32> to vector<8x16xf32>
    %cst_30 = arith.constant 0.899999976 : f32
    %70 = vector.broadcast %cst_30 : f32 to vector<8x16xf32>
    %71 = arith.mulf %70, %36 : vector<8x16xf32>
    %72 = arith.addf %71, %65 : vector<8x16xf32>
    %cst_31 = arith.constant 1.000000e+00 : f32
    %73 = vector.broadcast %cst_31 : f32 to vector<8x16xf32>
    %74 = arith.mulf %69, %73 : vector<8x16xf32>
    %75 = arith.subf %72, %74 : vector<8x16xf32>
    %cst_32 = arith.constant 1.000000e+00 : f32
    %76 = vector.broadcast %cst_32 : f32 to vector<8x16xf32>
    %77 = arith.cmpf ogt, %75, %76 : vector<8x16xf32>
    %78 = arith.extui %77 : vector<8x16xi1> to vector<8x16xi32>
    %79 = arith.sitofp %78 : vector<8x16xi32> to vector<8x16xf32>
    %80 = arith.index_cast %c1_i32 : i32 to index
    %c0_33 = arith.constant 0 : index
    %c0_34 = arith.constant 0 : index
    %81 = vector.load %arg5[%80, %c0_33, %c0_34] : memref<25x8x16xf32, #tpu.memory_space<vmem>>, vector<1x8x16xf32>
    %82 = vector.shape_cast %81 : vector<1x8x16xf32> to vector<8x16xf32>
    %83 = vector.shape_cast %79 : vector<8x16xf32> to vector<1x8x16xf32>
    tpu.vector_store %arg5[%80, %c0_33, %c0_34], %83 {strides = array<i32>} : memref<25x8x16xf32, #tpu.memory_space<vmem>>, vector<1x8x16xf32>,
    %84 = arith.index_cast %c1_i32 : i32 to index
    %c0_35 = arith.constant 0 : index
    %c0_36 = arith.constant 0 : index
    %85 = vector.load %arg6[%84, %c0_35, %c0_36] : memref<25x8x16xf32, #tpu.memory_space<vmem>>, vector<1x8x16xf32>
    %86 = vector.shape_cast %85 : vector<1x8x16xf32> to vector<8x16xf32>
    %87 = vector.shape_cast %75 : vector<8x16xf32> to vector<1x8x16xf32>
    tpu.vector_store %arg6[%84, %c0_35, %c0_36], %87 {strides = array<i32>} : memref<25x8x16xf32, #tpu.memory_space<vmem>>, vector<1x8x16xf32>,
    %c2_i32 = arith.constant 2 : i32
    %cst_37 = arith.constant 1.000000e+00 : f32
    %88 = vector.broadcast %cst_37 : f32 to vector<8x32xf32>
    %89 = arith.cmpf ogt, %58, %88 : vector<8x32xf32>
    %90 = arith.extui %89 : vector<8x32xi1> to vector<8x32xi32>
    %91 = arith.sitofp %90 : vector<8x32xi32> to vector<8x32xf32>
    %cst_38 = arith.constant 0.899999976 : f32
    %92 = vector.broadcast %cst_38 : f32 to vector<8x32xf32>
    %93 = arith.mulf %92, %58 : vector<8x32xf32>
    %94 = arith.addf %93, %7 : vector<8x32xf32>
    %cst_39 = arith.constant 1.000000e+00 : f32
    %95 = vector.broadcast %cst_39 : f32 to vector<8x32xf32>
    %96 = arith.mulf %91, %95 : vector<8x32xf32>
    %97 = arith.subf %94, %96 : vector<8x32xf32>
    %cst_40 = arith.constant 1.000000e+00 : f32
    %98 = vector.broadcast %cst_40 : f32 to vector<8x32xf32>
    %99 = arith.cmpf ogt, %97, %98 : vector<8x32xf32>
    %100 = arith.extui %99 : vector<8x32xi1> to vector<8x32xi32>
    %101 = arith.sitofp %100 : vector<8x32xi32> to vector<8x32xf32>
    %cst_41 = arith.constant dense<0.000000e+00> : vector<8x16xf32>
    %102 = tpu.matmul %101, %1, %cst_41 {dimension_numbers = #tpu.dot_dimension_numbers<[1], [0], [0], [1], [0, 0, 1, 1], [], []>} : vector<8x32xf32>, vector<32x16xf32>, vector<8x16xf32> -> vector<8x16xf32>
    %103 = vector.broadcast %2 : vector<1x16xf32> to vector<8x16xf32>
    %104 = arith.addf %102, %103 : vector<8x16xf32>
    %cst_42 = arith.constant 1.000000e+00 : f32
    %105 = vector.broadcast %cst_42 : f32 to vector<8x16xf32>
    %106 = arith.cmpf ogt, %75, %105 : vector<8x16xf32>
    %107 = arith.extui %106 : vector<8x16xi1> to vector<8x16xi32>
    %108 = arith.sitofp %107 : vector<8x16xi32> to vector<8x16xf32>
    %cst_43 = arith.constant 0.899999976 : f32
    %109 = vector.broadcast %cst_43 : f32 to vector<8x16xf32>
    %110 = arith.mulf %109, %75 : vector<8x16xf32>
    %111 = arith.addf %110, %104 : vector<8x16xf32>
    %cst_44 = arith.constant 1.000000e+00 : f32
    %112 = vector.broadcast %cst_44 : f32 to vector<8x16xf32>
    %113 = arith.mulf %108, %112 : vector<8x16xf32>
    %114 = arith.subf %111, %113 : vector<8x16xf32>
    %cst_45 = arith.constant 1.000000e+00 : f32
    %115 = vector.broadcast %cst_45 : f32 to vector<8x16xf32>
    %116 = arith.cmpf ogt, %114, %115 : vector<8x16xf32>
    %117 = arith.extui %116 : vector<8x16xi1> to vector<8x16xi32>
    %118 = arith.sitofp %117 : vector<8x16xi32> to vector<8x16xf32>
    %119 = arith.index_cast %c2_i32 : i32 to index
    %c0_46 = arith.constant 0 : index
    %c0_47 = arith.constant 0 : index
    %120 = vector.load %arg5[%119, %c0_46, %c0_47] : memref<25x8x16xf32, #tpu.memory_space<vmem>>, vector<1x8x16xf32>
    %121 = vector.shape_cast %120 : vector<1x8x16xf32> to vector<8x16xf32>
    %122 = vector.shape_cast %118 : vector<8x16xf32> to vector<1x8x16xf32>
    tpu.vector_store %arg5[%119, %c0_46, %c0_47], %122 {strides = array<i32>} : memref<25x8x16xf32, #tpu.memory_space<vmem>>, vector<1x8x16xf32>,
    %123 = arith.index_cast %c2_i32 : i32 to index
    %c0_48 = arith.constant 0 : index
    %c0_49 = arith.constant 0 : index
    %124 = vector.load %arg6[%123, %c0_48, %c0_49] : memref<25x8x16xf32, #tpu.memory_space<vmem>>, vector<1x8x16xf32>
    %125 = vector.shape_cast %124 : vector<1x8x16xf32> to vector<8x16xf32>
    %126 = vector.shape_cast %114 : vector<8x16xf32> to vector<1x8x16xf32>
    tpu.vector_store %arg6[%123, %c0_48, %c0_49], %126 {strides = array<i32>} : memref<25x8x16xf32, #tpu.memory_space<vmem>>, vector<1x8x16xf32>,
    %c3_i32 = arith.constant 3 : i32
    %cst_50 = arith.constant 1.000000e+00 : f32
    %127 = vector.broadcast %cst_50 : f32 to vector<8x32xf32>
    %128 = arith.cmpf ogt, %97, %127 : vector<8x32xf32>
    %129 = arith.extui %128 : vector<8x32xi1> to vector<8x32xi32>
    %130 = arith.sitofp %129 : vector<8x32xi32> to vector<8x32xf32>
    %cst_51 = arith.constant 0.899999976 : f32
    %131 = vector.broadcast %cst_51 : f32 to vector<8x32xf32>
    %132 = arith.mulf %131, %97 : vector<8x32xf32>
    %133 = arith.addf %132, %7 : vector<8x32xf32>
    %cst_52 = arith.constant 1.000000e+00 : f32
    %134 = vector.broadcast %cst_52 : f32 to vector<8x32xf32>
    %135 = arith.mulf %130, %134 : vector<8x32xf32>
    %136 = arith.subf %133, %135 : vector<8x32xf32>
    %cst_53 = arith.constant 1.000000e+00 : f32
    %137 = vector.broadcast %cst_53 : f32 to vector<8x32xf32>
    %138 = arith.cmpf ogt, %136, %137 : vector<8x32xf32>
    %139 = arith.extui %138 : vector<8x32xi1> to vector<8x32xi32>
    %140 = arith.sitofp %139 : vector<8x32xi32> to vector<8x32xf32>
    %cst_54 = arith.constant dense<0.000000e+00> : vector<8x16xf32>
    %141 = tpu.matmul %140, %1, %cst_54 {dimension_numbers = #tpu.dot_dimension_numbers<[1], [0], [0], [1], [0, 0, 1, 1], [], []>} : vector<8x32xf32>, vector<32x16xf32>, vector<8x16xf32> -> vector<8x16xf32>
    %142 = vector.broadcast %2 : vector<1x16xf32> to vector<8x16xf32>
    %143 = arith.addf %141, %142 : vector<8x16xf32>
    %cst_55 = arith.constant 1.000000e+00 : f32
    %144 = vector.broadcast %cst_55 : f32 to vector<8x16xf32>
    %145 = arith.cmpf ogt, %114, %144 : vector<8x16xf32>
    %146 = arith.extui %145 : vector<8x16xi1> to vector<8x16xi32>
    %147 = arith.sitofp %146 : vector<8x16xi32> to vector<8x16xf32>
    %cst_56 = arith.constant 0.899999976 : f32
    %148 = vector.broadcast %cst_56 : f32 to vector<8x16xf32>
    %149 = arith.mulf %148, %114 : vector<8x16xf32>
    %150 = arith.addf %149, %143 : vector<8x16xf32>
    %cst_57 = arith.constant 1.000000e+00 : f32
    %151 = vector.broadcast %cst_57 : f32 to vector<8x16xf32>
    %152 = arith.mulf %147, %151 : vector<8x16xf32>
    %153 = arith.subf %150, %152 : vector<8x16xf32>
    %cst_58 = arith.constant 1.000000e+00 : f32
    %154 = vector.broadcast %cst_58 : f32 to vector<8x16xf32>
    %155 = arith.cmpf ogt, %153, %154 : vector<8x16xf32>
    %156 = arith.extui %155 : vector<8x16xi1> to vector<8x16xi32>
    %157 = arith.sitofp %156 : vector<8x16xi32> to vector<8x16xf32>
    %158 = arith.index_cast %c3_i32 : i32 to index
    %c0_59 = arith.constant 0 : index
    %c0_60 = arith.constant 0 : index
    %159 = vector.load %arg5[%158, %c0_59, %c0_60] : memref<25x8x16xf32, #tpu.memory_space<vmem>>, vector<1x8x16xf32>
    %160 = vector.shape_cast %159 : vector<1x8x16xf32> to vector<8x16xf32>
    %161 = vector.shape_cast %157 : vector<8x16xf32> to vector<1x8x16xf32>
    tpu.vector_store %arg5[%158, %c0_59, %c0_60], %161 {strides = array<i32>} : memref<25x8x16xf32, #tpu.memory_space<vmem>>, vector<1x8x16xf32>,
    %162 = arith.index_cast %c3_i32 : i32 to index
    %c0_61 = arith.constant 0 : index
    %c0_62 = arith.constant 0 : index
    %163 = vector.load %arg6[%162, %c0_61, %c0_62] : memref<25x8x16xf32, #tpu.memory_space<vmem>>, vector<1x8x16xf32>
    %164 = vector.shape_cast %163 : vector<1x8x16xf32> to vector<8x16xf32>
    %165 = vector.shape_cast %153 : vector<8x16xf32> to vector<1x8x16xf32>
    tpu.vector_store %arg6[%162, %c0_61, %c0_62], %165 {strides = array<i32>} : memref<25x8x16xf32, #tpu.memory_space<vmem>>, vector<1x8x16xf32>,
    %c4_i32 = arith.constant 4 : i32
    %cst_63 = arith.constant 1.000000e+00 : f32
    %166 = vector.broadcast %cst_63 : f32 to vector<8x32xf32>
    %167 = arith.cmpf ogt, %136, %166 : vector<8x32xf32>
    %168 = arith.extui %167 : vector<8x32xi1> to vector<8x32xi32>
    %169 = arith.sitofp %168 : vector<8x32xi32> to vector<8x32xf32>
    %cst_64 = arith.constant 0.899999976 : f32
    %170 = vector.broadcast %cst_64 : f32 to vector<8x32xf32>
    %171 = arith.mulf %170, %136 : vector<8x32xf32>
    %172 = arith.addf %171, %7 : vector<8x32xf32>
    %cst_65 = arith.constant 1.000000e+00 : f32
    %173 = vector.broadcast %cst_65 : f32 to vector<8x32xf32>
    %174 = arith.mulf %169, %173 : vector<8x32xf32>
    %175 = arith.subf %172, %174 : vector<8x32xf32>
    %cst_66 = arith.constant 1.000000e+00 : f32
    %176 = vector.broadcast %cst_66 : f32 to vector<8x32xf32>
    %177 = arith.cmpf ogt, %175, %176 : vector<8x32xf32>
    %178 = arith.extui %177 : vector<8x32xi1> to vector<8x32xi32>
    %179 = arith.sitofp %178 : vector<8x32xi32> to vector<8x32xf32>
    %cst_67 = arith.constant dense<0.000000e+00> : vector<8x16xf32>
    %180 = tpu.matmul %179, %1, %cst_67 {dimension_numbers = #tpu.dot_dimension_numbers<[1], [0], [0], [1], [0, 0, 1, 1], [], []>} : vector<8x32xf32>, vector<32x16xf32>, vector<8x16xf32> -> vector<8x16xf32>
    %181 = vector.broadcast %2 : vector<1x16xf32> to vector<8x16xf32>
    %182 = arith.addf %180, %181 : vector<8x16xf32>
    %cst_68 = arith.constant 1.000000e+00 : f32
    %183 = vector.broadcast %cst_68 : f32 to vector<8x16xf32>
    %184 = arith.cmpf ogt, %153, %183 : vector<8x16xf32>
    %185 = arith.extui %184 : vector<8x16xi1> to vector<8x16xi32>
    %186 = arith.sitofp %185 : vector<8x16xi32> to vector<8x16xf32>
    %cst_69 = arith.constant 0.899999976 : f32
    %187 = vector.broadcast %cst_69 : f32 to vector<8x16xf32>
    %188 = arith.mulf %187, %153 : vector<8x16xf32>
    %189 = arith.addf %188, %182 : vector<8x16xf32>
    %cst_70 = arith.constant 1.000000e+00 : f32
    %190 = vector.broadcast %cst_70 : f32 to vector<8x16xf32>
    %191 = arith.mulf %186, %190 : vector<8x16xf32>
    %192 = arith.subf %189, %191 : vector<8x16xf32>
    %cst_71 = arith.constant 1.000000e+00 : f32
    %193 = vector.broadcast %cst_71 : f32 to vector<8x16xf32>
    %194 = arith.cmpf ogt, %192, %193 : vector<8x16xf32>
    %195 = arith.extui %194 : vector<8x16xi1> to vector<8x16xi32>
    %196 = arith.sitofp %195 : vector<8x16xi32> to vector<8x16xf32>
    %197 = arith.index_cast %c4_i32 : i32 to index
    %c0_72 = arith.constant 0 : index
    %c0_73 = arith.constant 0 : index
    %198 = vector.load %arg5[%197, %c0_72, %c0_73] : memref<25x8x16xf32, #tpu.memory_space<vmem>>, vector<1x8x16xf32>
    %199 = vector.shape_cast %198 : vector<1x8x16xf32> to vector<8x16xf32>
    %200 = vector.shape_cast %196 : vector<8x16xf32> to vector<1x8x16xf32>
    tpu.vector_store %arg5[%197, %c0_72, %c0_73], %200 {strides = array<i32>} : memref<25x8x16xf32, #tpu.memory_space<vmem>>, vector<1x8x16xf32>,
    %201 = arith.index_cast %c4_i32 : i32 to index
    %c0_74 = arith.constant 0 : index
    %c0_75 = arith.constant 0 : index
    %202 = vector.load %arg6[%201, %c0_74, %c0_75] : memref<25x8x16xf32, #tpu.memory_space<vmem>>, vector<1x8x16xf32>
    %203 = vector.shape_cast %202 : vector<1x8x16xf32> to vector<8x16xf32>
    %204 = vector.shape_cast %192 : vector<8x16xf32> to vector<1x8x16xf32>
    tpu.vector_store %arg6[%201, %c0_74, %c0_75], %204 {strides = array<i32>} : memref<25x8x16xf32, #tpu.memory_space<vmem>>, vector<1x8x16xf32>,
    %c5_i32 = arith.constant 5 : i32
    %cst_76 = arith.constant 1.000000e+00 : f32
    %205 = vector.broadcast %cst_76 : f32 to vector<8x32xf32>
    %206 = arith.cmpf ogt, %175, %205 : vector<8x32xf32>
    %207 = arith.extui %206 : vector<8x32xi1> to vector<8x32xi32>
    %208 = arith.sitofp %207 : vector<8x32xi32> to vector<8x32xf32>
    %cst_77 = arith.constant 0.899999976 : f32
    %209 = vector.broadcast %cst_77 : f32 to vector<8x32xf32>
    %210 = arith.mulf %209, %175 : vector<8x32xf32>
    %211 = arith.addf %210, %7 : vector<8x32xf32>
    %cst_78 = arith.constant 1.000000e+00 : f32
    %212 = vector.broadcast %cst_78 : f32 to vector<8x32xf32>
    %213 = arith.mulf %208, %212 : vector<8x32xf32>
    %214 = arith.subf %211, %213 : vector<8x32xf32>
    %cst_79 = arith.constant 1.000000e+00 : f32
    %215 = vector.broadcast %cst_79 : f32 to vector<8x32xf32>
    %216 = arith.cmpf ogt, %214, %215 : vector<8x32xf32>
    %217 = arith.extui %216 : vector<8x32xi1> to vector<8x32xi32>
    %218 = arith.sitofp %217 : vector<8x32xi32> to vector<8x32xf32>
    %cst_80 = arith.constant dense<0.000000e+00> : vector<8x16xf32>
    %219 = tpu.matmul %218, %1, %cst_80 {dimension_numbers = #tpu.dot_dimension_numbers<[1], [0], [0], [1], [0, 0, 1, 1], [], []>} : vector<8x32xf32>, vector<32x16xf32>, vector<8x16xf32> -> vector<8x16xf32>
    %220 = vector.broadcast %2 : vector<1x16xf32> to vector<8x16xf32>
    %221 = arith.addf %219, %220 : vector<8x16xf32>
    %cst_81 = arith.constant 1.000000e+00 : f32
    %222 = vector.broadcast %cst_81 : f32 to vector<8x16xf32>
    %223 = arith.cmpf ogt, %192, %222 : vector<8x16xf32>
    %224 = arith.extui %223 : vector<8x16xi1> to vector<8x16xi32>
    %225 = arith.sitofp %224 : vector<8x16xi32> to vector<8x16xf32>
    %cst_82 = arith.constant 0.899999976 : f32
    %226 = vector.broadcast %cst_82 : f32 to vector<8x16xf32>
    %227 = arith.mulf %226, %192 : vector<8x16xf32>
    %228 = arith.addf %227, %221 : vector<8x16xf32>
    %cst_83 = arith.constant 1.000000e+00 : f32
    %229 = vector.broadcast %cst_83 : f32 to vector<8x16xf32>
    %230 = arith.mulf %225, %229 : vector<8x16xf32>
    %231 = arith.subf %228, %230 : vector<8x16xf32>
    %cst_84 = arith.constant 1.000000e+00 : f32
    %232 = vector.broadcast %cst_84 : f32 to vector<8x16xf32>
    %233 = arith.cmpf ogt, %231, %232 : vector<8x16xf32>
    %234 = arith.extui %233 : vector<8x16xi1> to vector<8x16xi32>
    %235 = arith.sitofp %234 : vector<8x16xi32> to vector<8x16xf32>
    %236 = arith.index_cast %c5_i32 : i32 to index
    %c0_85 = arith.constant 0 : index
    %c0_86 = arith.constant 0 : index
    %237 = vector.load %arg5[%236, %c0_85, %c0_86] : memref<25x8x16xf32, #tpu.memory_space<vmem>>, vector<1x8x16xf32>
    %238 = vector.shape_cast %237 : vector<1x8x16xf32> to vector<8x16xf32>
    %239 = vector.shape_cast %235 : vector<8x16xf32> to vector<1x8x16xf32>
    tpu.vector_store %arg5[%236, %c0_85, %c0_86], %239 {strides = array<i32>} : memref<25x8x16xf32, #tpu.memory_space<vmem>>, vector<1x8x16xf32>,
    %240 = arith.index_cast %c5_i32 : i32 to index
    %c0_87 = arith.constant 0 : index
    %c0_88 = arith.constant 0 : index
    %241 = vector.load %arg6[%240, %c0_87, %c0_88] : memref<25x8x16xf32, #tpu.memory_space<vmem>>, vector<1x8x16xf32>
    %242 = vector.shape_cast %241 : vector<1x8x16xf32> to vector<8x16xf32>
    %243 = vector.shape_cast %231 : vector<8x16xf32> to vector<1x8x16xf32>
    tpu.vector_store %arg6[%240, %c0_87, %c0_88], %243 {strides = array<i32>} : memref<25x8x16xf32, #tpu.memory_space<vmem>>, vector<1x8x16xf32>,
    %c6_i32 = arith.constant 6 : i32
    %cst_89 = arith.constant 1.000000e+00 : f32
    %244 = vector.broadcast %cst_89 : f32 to vector<8x32xf32>
    %245 = arith.cmpf ogt, %214, %244 : vector<8x32xf32>
    %246 = arith.extui %245 : vector<8x32xi1> to vector<8x32xi32>
    %247 = arith.sitofp %246 : vector<8x32xi32> to vector<8x32xf32>
    %cst_90 = arith.constant 0.899999976 : f32
    %248 = vector.broadcast %cst_90 : f32 to vector<8x32xf32>
    %249 = arith.mulf %248, %214 : vector<8x32xf32>
    %250 = arith.addf %249, %7 : vector<8x32xf32>
    %cst_91 = arith.constant 1.000000e+00 : f32
    %251 = vector.broadcast %cst_91 : f32 to vector<8x32xf32>
    %252 = arith.mulf %247, %251 : vector<8x32xf32>
    %253 = arith.subf %250, %252 : vector<8x32xf32>
    %cst_92 = arith.constant 1.000000e+00 : f32
    %254 = vector.broadcast %cst_92 : f32 to vector<8x32xf32>
    %255 = arith.cmpf ogt, %253, %254 : vector<8x32xf32>
    %256 = arith.extui %255 : vector<8x32xi1> to vector<8x32xi32>
    %257 = arith.sitofp %256 : vector<8x32xi32> to vector<8x32xf32>
    %cst_93 = arith.constant dense<0.000000e+00> : vector<8x16xf32>
    %258 = tpu.matmul %257, %1, %cst_93 {dimension_numbers = #tpu.dot_dimension_numbers<[1], [0], [0], [1], [0, 0, 1, 1], [], []>} : vector<8x32xf32>, vector<32x16xf32>, vector<8x16xf32> -> vector<8x16xf32>
    %259 = vector.broadcast %2 : vector<1x16xf32> to vector<8x16xf32>
    %260 = arith.addf %258, %259 : vector<8x16xf32>
    %cst_94 = arith.constant 1.000000e+00 : f32
    %261 = vector.broadcast %cst_94 : f32 to vector<8x16xf32>
    %262 = arith.cmpf ogt, %231, %261 : vector<8x16xf32>
    %263 = arith.extui %262 : vector<8x16xi1> to vector<8x16xi32>
    %264 = arith.sitofp %263 : vector<8x16xi32> to vector<8x16xf32>
    %cst_95 = arith.constant 0.899999976 : f32
    %265 = vector.broadcast %cst_95 : f32 to vector<8x16xf32>
    %266 = arith.mulf %265, %231 : vector<8x16xf32>
    %267 = arith.addf %266, %260 : vector<8x16xf32>
    %cst_96 = arith.constant 1.000000e+00 : f32
    %268 = vector.broadcast %cst_96 : f32 to vector<8x16xf32>
    %269 = arith.mulf %264, %268 : vector<8x16xf32>
    %270 = arith.subf %267, %269 : vector<8x16xf32>
    %cst_97 = arith.constant 1.000000e+00 : f32
    %271 = vector.broadcast %cst_97 : f32 to vector<8x16xf32>
    %272 = arith.cmpf ogt, %270, %271 : vector<8x16xf32>
    %273 = arith.extui %272 : vector<8x16xi1> to vector<8x16xi32>
    %274 = arith.sitofp %273 : vector<8x16xi32> to vector<8x16xf32>
    %275 = arith.index_cast %c6_i32 : i32 to index
    %c0_98 = arith.constant 0 : index
    %c0_99 = arith.constant 0 : index
    %276 = vector.load %arg5[%275, %c0_98, %c0_99] : memref<25x8x16xf32, #tpu.memory_space<vmem>>, vector<1x8x16xf32>
    %277 = vector.shape_cast %276 : vector<1x8x16xf32> to vector<8x16xf32>
    %278 = vector.shape_cast %274 : vector<8x16xf32> to vector<1x8x16xf32>
    tpu.vector_store %arg5[%275, %c0_98, %c0_99], %278 {strides = array<i32>} : memref<25x8x16xf32, #tpu.memory_space<vmem>>, vector<1x8x16xf32>,
    %279 = arith.index_cast %c6_i32 : i32 to index
    %c0_100 = arith.constant 0 : index
    %c0_101 = arith.constant 0 : index
    %280 = vector.load %arg6[%279, %c0_100, %c0_101] : memref<25x8x16xf32, #tpu.memory_space<vmem>>, vector<1x8x16xf32>
    %281 = vector.shape_cast %280 : vector<1x8x16xf32> to vector<8x16xf32>
    %282 = vector.shape_cast %270 : vector<8x16xf32> to vector<1x8x16xf32>
    tpu.vector_store %arg6[%279, %c0_100, %c0_101], %282 {strides = array<i32>} : memref<25x8x16xf32, #tpu.memory_space<vmem>>, vector<1x8x16xf32>,
    %c7_i32 = arith.constant 7 : i32
    %cst_102 = arith.constant 1.000000e+00 : f32
    %283 = vector.broadcast %cst_102 : f32 to vector<8x32xf32>
    %284 = arith.cmpf ogt, %253, %283 : vector<8x32xf32>
    %285 = arith.extui %284 : vector<8x32xi1> to vector<8x32xi32>
    %286 = arith.sitofp %285 : vector<8x32xi32> to vector<8x32xf32>
    %cst_103 = arith.constant 0.899999976 : f32
    %287 = vector.broadcast %cst_103 : f32 to vector<8x32xf32>
    %288 = arith.mulf %287, %253 : vector<8x32xf32>
    %289 = arith.addf %288, %7 : vector<8x32xf32>
    %cst_104 = arith.constant 1.000000e+00 : f32
    %290 = vector.broadcast %cst_104 : f32 to vector<8x32xf32>
    %291 = arith.mulf %286, %290 : vector<8x32xf32>
    %292 = arith.subf %289, %291 : vector<8x32xf32>
    %cst_105 = arith.constant 1.000000e+00 : f32
    %293 = vector.broadcast %cst_105 : f32 to vector<8x32xf32>
    %294 = arith.cmpf ogt, %292, %293 : vector<8x32xf32>
    %295 = arith.extui %294 : vector<8x32xi1> to vector<8x32xi32>
    %296 = arith.sitofp %295 : vector<8x32xi32> to vector<8x32xf32>
    %cst_106 = arith.constant dense<0.000000e+00> : vector<8x16xf32>
    %297 = tpu.matmul %296, %1, %cst_106 {dimension_numbers = #tpu.dot_dimension_numbers<[1], [0], [0], [1], [0, 0, 1, 1], [], []>} : vector<8x32xf32>, vector<32x16xf32>, vector<8x16xf32> -> vector<8x16xf32>
    %298 = vector.broadcast %2 : vector<1x16xf32> to vector<8x16xf32>
    %299 = arith.addf %297, %298 : vector<8x16xf32>
    %cst_107 = arith.constant 1.000000e+00 : f32
    %300 = vector.broadcast %cst_107 : f32 to vector<8x16xf32>
    %301 = arith.cmpf ogt, %270, %300 : vector<8x16xf32>
    %302 = arith.extui %301 : vector<8x16xi1> to vector<8x16xi32>
    %303 = arith.sitofp %302 : vector<8x16xi32> to vector<8x16xf32>
    %cst_108 = arith.constant 0.899999976 : f32
    %304 = vector.broadcast %cst_108 : f32 to vector<8x16xf32>
    %305 = arith.mulf %304, %270 : vector<8x16xf32>
    %306 = arith.addf %305, %299 : vector<8x16xf32>
    %cst_109 = arith.constant 1.000000e+00 : f32
    %307 = vector.broadcast %cst_109 : f32 to vector<8x16xf32>
    %308 = arith.mulf %303, %307 : vector<8x16xf32>
    %309 = arith.subf %306, %308 : vector<8x16xf32>
    %cst_110 = arith.constant 1.000000e+00 : f32
    %310 = vector.broadcast %cst_110 : f32 to vector<8x16xf32>
    %311 = arith.cmpf ogt, %309, %310 : vector<8x16xf32>
    %312 = arith.extui %311 : vector<8x16xi1> to vector<8x16xi32>
    %313 = arith.sitofp %312 : vector<8x16xi32> to vector<8x16xf32>
    %314 = arith.index_cast %c7_i32 : i32 to index
    %c0_111 = arith.constant 0 : index
    %c0_112 = arith.constant 0 : index
    %315 = vector.load %arg5[%314, %c0_111, %c0_112] : memref<25x8x16xf32, #tpu.memory_space<vmem>>, vector<1x8x16xf32>
    %316 = vector.shape_cast %315 : vector<1x8x16xf32> to vector<8x16xf32>
    %317 = vector.shape_cast %313 : vector<8x16xf32> to vector<1x8x16xf32>
    tpu.vector_store %arg5[%314, %c0_111, %c0_112], %317 {strides = array<i32>} : memref<25x8x16xf32, #tpu.memory_space<vmem>>, vector<1x8x16xf32>,
    %318 = arith.index_cast %c7_i32 : i32 to index
    %c0_113 = arith.constant 0 : index
    %c0_114 = arith.constant 0 : index
    %319 = vector.load %arg6[%318, %c0_113, %c0_114] : memref<25x8x16xf32, #tpu.memory_space<vmem>>, vector<1x8x16xf32>
    %320 = vector.shape_cast %319 : vector<1x8x16xf32> to vector<8x16xf32>
    %321 = vector.shape_cast %309 : vector<8x16xf32> to vector<1x8x16xf32>
    tpu.vector_store %arg6[%318, %c0_113, %c0_114], %321 {strides = array<i32>} : memref<25x8x16xf32, #tpu.memory_space<vmem>>, vector<1x8x16xf32>,
    %c8_i32 = arith.constant 8 : i32
    %cst_115 = arith.constant 1.000000e+00 : f32
    %322 = vector.broadcast %cst_115 : f32 to vector<8x32xf32>
    %323 = arith.cmpf ogt, %292, %322 : vector<8x32xf32>
    %324 = arith.extui %323 : vector<8x32xi1> to vector<8x32xi32>
    %325 = arith.sitofp %324 : vector<8x32xi32> to vector<8x32xf32>
    %cst_116 = arith.constant 0.899999976 : f32
    %326 = vector.broadcast %cst_116 : f32 to vector<8x32xf32>
    %327 = arith.mulf %326, %292 : vector<8x32xf32>
    %328 = arith.addf %327, %7 : vector<8x32xf32>
    %cst_117 = arith.constant 1.000000e+00 : f32
    %329 = vector.broadcast %cst_117 : f32 to vector<8x32xf32>
    %330 = arith.mulf %325, %329 : vector<8x32xf32>
    %331 = arith.subf %328, %330 : vector<8x32xf32>
    %cst_118 = arith.constant 1.000000e+00 : f32
    %332 = vector.broadcast %cst_118 : f32 to vector<8x32xf32>
    %333 = arith.cmpf ogt, %331, %332 : vector<8x32xf32>
    %334 = arith.extui %333 : vector<8x32xi1> to vector<8x32xi32>
    %335 = arith.sitofp %334 : vector<8x32xi32> to vector<8x32xf32>
    %cst_119 = arith.constant dense<0.000000e+00> : vector<8x16xf32>
    %336 = tpu.matmul %335, %1, %cst_119 {dimension_numbers = #tpu.dot_dimension_numbers<[1], [0], [0], [1], [0, 0, 1, 1], [], []>} : vector<8x32xf32>, vector<32x16xf32>, vector<8x16xf32> -> vector<8x16xf32>
    %337 = vector.broadcast %2 : vector<1x16xf32> to vector<8x16xf32>
    %338 = arith.addf %336, %337 : vector<8x16xf32>
    %cst_120 = arith.constant 1.000000e+00 : f32
    %339 = vector.broadcast %cst_120 : f32 to vector<8x16xf32>
    %340 = arith.cmpf ogt, %309, %339 : vector<8x16xf32>
    %341 = arith.extui %340 : vector<8x16xi1> to vector<8x16xi32>
    %342 = arith.sitofp %341 : vector<8x16xi32> to vector<8x16xf32>
    %cst_121 = arith.constant 0.899999976 : f32
    %343 = vector.broadcast %cst_121 : f32 to vector<8x16xf32>
    %344 = arith.mulf %343, %309 : vector<8x16xf32>
    %345 = arith.addf %344, %338 : vector<8x16xf32>
    %cst_122 = arith.constant 1.000000e+00 : f32
    %346 = vector.broadcast %cst_122 : f32 to vector<8x16xf32>
    %347 = arith.mulf %342, %346 : vector<8x16xf32>
    %348 = arith.subf %345, %347 : vector<8x16xf32>
    %cst_123 = arith.constant 1.000000e+00 : f32
    %349 = vector.broadcast %cst_123 : f32 to vector<8x16xf32>
    %350 = arith.cmpf ogt, %348, %349 : vector<8x16xf32>
    %351 = arith.extui %350 : vector<8x16xi1> to vector<8x16xi32>
    %352 = arith.sitofp %351 : vector<8x16xi32> to vector<8x16xf32>
    %353 = arith.index_cast %c8_i32 : i32 to index
    %c0_124 = arith.constant 0 : index
    %c0_125 = arith.constant 0 : index
    %354 = vector.load %arg5[%353, %c0_124, %c0_125] : memref<25x8x16xf32, #tpu.memory_space<vmem>>, vector<1x8x16xf32>
    %355 = vector.shape_cast %354 : vector<1x8x16xf32> to vector<8x16xf32>
    %356 = vector.shape_cast %352 : vector<8x16xf32> to vector<1x8x16xf32>
    tpu.vector_store %arg5[%353, %c0_124, %c0_125], %356 {strides = array<i32>} : memref<25x8x16xf32, #tpu.memory_space<vmem>>, vector<1x8x16xf32>,
    %357 = arith.index_cast %c8_i32 : i32 to index
    %c0_126 = arith.constant 0 : index
    %c0_127 = arith.constant 0 : index
    %358 = vector.load %arg6[%357, %c0_126, %c0_127] : memref<25x8x16xf32, #tpu.memory_space<vmem>>, vector<1x8x16xf32>
    %359 = vector.shape_cast %358 : vector<1x8x16xf32> to vector<8x16xf32>
    %360 = vector.shape_cast %348 : vector<8x16xf32> to vector<1x8x16xf32>
    tpu.vector_store %arg6[%357, %c0_126, %c0_127], %360 {strides = array<i32>} : memref<25x8x16xf32, #tpu.memory_space<vmem>>, vector<1x8x16xf32>,
    %c9_i32 = arith.constant 9 : i32
    %cst_128 = arith.constant 1.000000e+00 : f32
    %361 = vector.broadcast %cst_128 : f32 to vector<8x32xf32>
    %362 = arith.cmpf ogt, %331, %361 : vector<8x32xf32>
    %363 = arith.extui %362 : vector<8x32xi1> to vector<8x32xi32>
    %364 = arith.sitofp %363 : vector<8x32xi32> to vector<8x32xf32>
    %cst_129 = arith.constant 0.899999976 : f32
    %365 = vector.broadcast %cst_129 : f32 to vector<8x32xf32>
    %366 = arith.mulf %365, %331 : vector<8x32xf32>
    %367 = arith.addf %366, %7 : vector<8x32xf32>
    %cst_130 = arith.constant 1.000000e+00 : f32
    %368 = vector.broadcast %cst_130 : f32 to vector<8x32xf32>
    %369 = arith.mulf %364, %368 : vector<8x32xf32>
    %370 = arith.subf %367, %369 : vector<8x32xf32>
    %cst_131 = arith.constant 1.000000e+00 : f32
    %371 = vector.broadcast %cst_131 : f32 to vector<8x32xf32>
    %372 = arith.cmpf ogt, %370, %371 : vector<8x32xf32>
    %373 = arith.extui %372 : vector<8x32xi1> to vector<8x32xi32>
    %374 = arith.sitofp %373 : vector<8x32xi32> to vector<8x32xf32>
    %cst_132 = arith.constant dense<0.000000e+00> : vector<8x16xf32>
    %375 = tpu.matmul %374, %1, %cst_132 {dimension_numbers = #tpu.dot_dimension_numbers<[1], [0], [0], [1], [0, 0, 1, 1], [], []>} : vector<8x32xf32>, vector<32x16xf32>, vector<8x16xf32> -> vector<8x16xf32>
    %376 = vector.broadcast %2 : vector<1x16xf32> to vector<8x16xf32>
    %377 = arith.addf %375, %376 : vector<8x16xf32>
    %cst_133 = arith.constant 1.000000e+00 : f32
    %378 = vector.broadcast %cst_133 : f32 to vector<8x16xf32>
    %379 = arith.cmpf ogt, %348, %378 : vector<8x16xf32>
    %380 = arith.extui %379 : vector<8x16xi1> to vector<8x16xi32>
    %381 = arith.sitofp %380 : vector<8x16xi32> to vector<8x16xf32>
    %cst_134 = arith.constant 0.899999976 : f32
    %382 = vector.broadcast %cst_134 : f32 to vector<8x16xf32>
    %383 = arith.mulf %382, %348 : vector<8x16xf32>
    %384 = arith.addf %383, %377 : vector<8x16xf32>
    %cst_135 = arith.constant 1.000000e+00 : f32
    %385 = vector.broadcast %cst_135 : f32 to vector<8x16xf32>
    %386 = arith.mulf %381, %385 : vector<8x16xf32>
    %387 = arith.subf %384, %386 : vector<8x16xf32>
    %cst_136 = arith.constant 1.000000e+00 : f32
    %388 = vector.broadcast %cst_136 : f32 to vector<8x16xf32>
    %389 = arith.cmpf ogt, %387, %388 : vector<8x16xf32>
    %390 = arith.extui %389 : vector<8x16xi1> to vector<8x16xi32>
    %391 = arith.sitofp %390 : vector<8x16xi32> to vector<8x16xf32>
    %392 = arith.index_cast %c9_i32 : i32 to index
    %c0_137 = arith.constant 0 : index
    %c0_138 = arith.constant 0 : index
    %393 = vector.load %arg5[%392, %c0_137, %c0_138] : memref<25x8x16xf32, #tpu.memory_space<vmem>>, vector<1x8x16xf32>
    %394 = vector.shape_cast %393 : vector<1x8x16xf32> to vector<8x16xf32>
    %395 = vector.shape_cast %391 : vector<8x16xf32> to vector<1x8x16xf32>
    tpu.vector_store %arg5[%392, %c0_137, %c0_138], %395 {strides = array<i32>} : memref<25x8x16xf32, #tpu.memory_space<vmem>>, vector<1x8x16xf32>,
    %396 = arith.index_cast %c9_i32 : i32 to index
    %c0_139 = arith.constant 0 : index
    %c0_140 = arith.constant 0 : index
    %397 = vector.load %arg6[%396, %c0_139, %c0_140] : memref<25x8x16xf32, #tpu.memory_space<vmem>>, vector<1x8x16xf32>
    %398 = vector.shape_cast %397 : vector<1x8x16xf32> to vector<8x16xf32>
    %399 = vector.shape_cast %387 : vector<8x16xf32> to vector<1x8x16xf32>
    tpu.vector_store %arg6[%396, %c0_139, %c0_140], %399 {strides = array<i32>} : memref<25x8x16xf32, #tpu.memory_space<vmem>>, vector<1x8x16xf32>,
    %c10_i32 = arith.constant 10 : i32
    %cst_141 = arith.constant 1.000000e+00 : f32
    %400 = vector.broadcast %cst_141 : f32 to vector<8x32xf32>
    %401 = arith.cmpf ogt, %370, %400 : vector<8x32xf32>
    %402 = arith.extui %401 : vector<8x32xi1> to vector<8x32xi32>
    %403 = arith.sitofp %402 : vector<8x32xi32> to vector<8x32xf32>
    %cst_142 = arith.constant 0.899999976 : f32
    %404 = vector.broadcast %cst_142 : f32 to vector<8x32xf32>
    %405 = arith.mulf %404, %370 : vector<8x32xf32>
    %406 = arith.addf %405, %7 : vector<8x32xf32>
    %cst_143 = arith.constant 1.000000e+00 : f32
    %407 = vector.broadcast %cst_143 : f32 to vector<8x32xf32>
    %408 = arith.mulf %403, %407 : vector<8x32xf32>
    %409 = arith.subf %406, %408 : vector<8x32xf32>
    %cst_144 = arith.constant 1.000000e+00 : f32
    %410 = vector.broadcast %cst_144 : f32 to vector<8x32xf32>
    %411 = arith.cmpf ogt, %409, %410 : vector<8x32xf32>
    %412 = arith.extui %411 : vector<8x32xi1> to vector<8x32xi32>
    %413 = arith.sitofp %412 : vector<8x32xi32> to vector<8x32xf32>
    %cst_145 = arith.constant dense<0.000000e+00> : vector<8x16xf32>
    %414 = tpu.matmul %413, %1, %cst_145 {dimension_numbers = #tpu.dot_dimension_numbers<[1], [0], [0], [1], [0, 0, 1, 1], [], []>} : vector<8x32xf32>, vector<32x16xf32>, vector<8x16xf32> -> vector<8x16xf32>
    %415 = vector.broadcast %2 : vector<1x16xf32> to vector<8x16xf32>
    %416 = arith.addf %414, %415 : vector<8x16xf32>
    %cst_146 = arith.constant 1.000000e+00 : f32
    %417 = vector.broadcast %cst_146 : f32 to vector<8x16xf32>
    %418 = arith.cmpf ogt, %387, %417 : vector<8x16xf32>
    %419 = arith.extui %418 : vector<8x16xi1> to vector<8x16xi32>
    %420 = arith.sitofp %419 : vector<8x16xi32> to vector<8x16xf32>
    %cst_147 = arith.constant 0.899999976 : f32
    %421 = vector.broadcast %cst_147 : f32 to vector<8x16xf32>
    %422 = arith.mulf %421, %387 : vector<8x16xf32>
    %423 = arith.addf %422, %416 : vector<8x16xf32>
    %cst_148 = arith.constant 1.000000e+00 : f32
    %424 = vector.broadcast %cst_148 : f32 to vector<8x16xf32>
    %425 = arith.mulf %420, %424 : vector<8x16xf32>
    %426 = arith.subf %423, %425 : vector<8x16xf32>
    %cst_149 = arith.constant 1.000000e+00 : f32
    %427 = vector.broadcast %cst_149 : f32 to vector<8x16xf32>
    %428 = arith.cmpf ogt, %426, %427 : vector<8x16xf32>
    %429 = arith.extui %428 : vector<8x16xi1> to vector<8x16xi32>
    %430 = arith.sitofp %429 : vector<8x16xi32> to vector<8x16xf32>
    %431 = arith.index_cast %c10_i32 : i32 to index
    %c0_150 = arith.constant 0 : index
    %c0_151 = arith.constant 0 : index
    %432 = vector.load %arg5[%431, %c0_150, %c0_151] : memref<25x8x16xf32, #tpu.memory_space<vmem>>, vector<1x8x16xf32>
    %433 = vector.shape_cast %432 : vector<1x8x16xf32> to vector<8x16xf32>
    %434 = vector.shape_cast %430 : vector<8x16xf32> to vector<1x8x16xf32>
    tpu.vector_store %arg5[%431, %c0_150, %c0_151], %434 {strides = array<i32>} : memref<25x8x16xf32, #tpu.memory_space<vmem>>, vector<1x8x16xf32>,
    %435 = arith.index_cast %c10_i32 : i32 to index
    %c0_152 = arith.constant 0 : index
    %c0_153 = arith.constant 0 : index
    %436 = vector.load %arg6[%435, %c0_152, %c0_153] : memref<25x8x16xf32, #tpu.memory_space<vmem>>, vector<1x8x16xf32>
    %437 = vector.shape_cast %436 : vector<1x8x16xf32> to vector<8x16xf32>
    %438 = vector.shape_cast %426 : vector<8x16xf32> to vector<1x8x16xf32>
    tpu.vector_store %arg6[%435, %c0_152, %c0_153], %438 {strides = array<i32>} : memref<25x8x16xf32, #tpu.memory_space<vmem>>, vector<1x8x16xf32>,
    %c11_i32 = arith.constant 11 : i32
    %cst_154 = arith.constant 1.000000e+00 : f32
    %439 = vector.broadcast %cst_154 : f32 to vector<8x32xf32>
    %440 = arith.cmpf ogt, %409, %439 : vector<8x32xf32>
    %441 = arith.extui %440 : vector<8x32xi1> to vector<8x32xi32>
    %442 = arith.sitofp %441 : vector<8x32xi32> to vector<8x32xf32>
    %cst_155 = arith.constant 0.899999976 : f32
    %443 = vector.broadcast %cst_155 : f32 to vector<8x32xf32>
    %444 = arith.mulf %443, %409 : vector<8x32xf32>
    %445 = arith.addf %444, %7 : vector<8x32xf32>
    %cst_156 = arith.constant 1.000000e+00 : f32
    %446 = vector.broadcast %cst_156 : f32 to vector<8x32xf32>
    %447 = arith.mulf %442, %446 : vector<8x32xf32>
    %448 = arith.subf %445, %447 : vector<8x32xf32>
    %cst_157 = arith.constant 1.000000e+00 : f32
    %449 = vector.broadcast %cst_157 : f32 to vector<8x32xf32>
    %450 = arith.cmpf ogt, %448, %449 : vector<8x32xf32>
    %451 = arith.extui %450 : vector<8x32xi1> to vector<8x32xi32>
    %452 = arith.sitofp %451 : vector<8x32xi32> to vector<8x32xf32>
    %cst_158 = arith.constant dense<0.000000e+00> : vector<8x16xf32>
    %453 = tpu.matmul %452, %1, %cst_158 {dimension_numbers = #tpu.dot_dimension_numbers<[1], [0], [0], [1], [0, 0, 1, 1], [], []>} : vector<8x32xf32>, vector<32x16xf32>, vector<8x16xf32> -> vector<8x16xf32>
    %454 = vector.broadcast %2 : vector<1x16xf32> to vector<8x16xf32>
    %455 = arith.addf %453, %454 : vector<8x16xf32>
    %cst_159 = arith.constant 1.000000e+00 : f32
    %456 = vector.broadcast %cst_159 : f32 to vector<8x16xf32>
    %457 = arith.cmpf ogt, %426, %456 : vector<8x16xf32>
    %458 = arith.extui %457 : vector<8x16xi1> to vector<8x16xi32>
    %459 = arith.sitofp %458 : vector<8x16xi32> to vector<8x16xf32>
    %cst_160 = arith.constant 0.899999976 : f32
    %460 = vector.broadcast %cst_160 : f32 to vector<8x16xf32>
    %461 = arith.mulf %460, %426 : vector<8x16xf32>
    %462 = arith.addf %461, %455 : vector<8x16xf32>
    %cst_161 = arith.constant 1.000000e+00 : f32
    %463 = vector.broadcast %cst_161 : f32 to vector<8x16xf32>
    %464 = arith.mulf %459, %463 : vector<8x16xf32>
    %465 = arith.subf %462, %464 : vector<8x16xf32>
    %cst_162 = arith.constant 1.000000e+00 : f32
    %466 = vector.broadcast %cst_162 : f32 to vector<8x16xf32>
    %467 = arith.cmpf ogt, %465, %466 : vector<8x16xf32>
    %468 = arith.extui %467 : vector<8x16xi1> to vector<8x16xi32>
    %469 = arith.sitofp %468 : vector<8x16xi32> to vector<8x16xf32>
    %470 = arith.index_cast %c11_i32 : i32 to index
    %c0_163 = arith.constant 0 : index
    %c0_164 = arith.constant 0 : index
    %471 = vector.load %arg5[%470, %c0_163, %c0_164] : memref<25x8x16xf32, #tpu.memory_space<vmem>>, vector<1x8x16xf32>
    %472 = vector.shape_cast %471 : vector<1x8x16xf32> to vector<8x16xf32>
    %473 = vector.shape_cast %469 : vector<8x16xf32> to vector<1x8x16xf32>
    tpu.vector_store %arg5[%470, %c0_163, %c0_164], %473 {strides = array<i32>} : memref<25x8x16xf32, #tpu.memory_space<vmem>>, vector<1x8x16xf32>,
    %474 = arith.index_cast %c11_i32 : i32 to index
    %c0_165 = arith.constant 0 : index
    %c0_166 = arith.constant 0 : index
    %475 = vector.load %arg6[%474, %c0_165, %c0_166] : memref<25x8x16xf32, #tpu.memory_space<vmem>>, vector<1x8x16xf32>
    %476 = vector.shape_cast %475 : vector<1x8x16xf32> to vector<8x16xf32>
    %477 = vector.shape_cast %465 : vector<8x16xf32> to vector<1x8x16xf32>
    tpu.vector_store %arg6[%474, %c0_165, %c0_166], %477 {strides = array<i32>} : memref<25x8x16xf32, #tpu.memory_space<vmem>>, vector<1x8x16xf32>,
    %c12_i32 = arith.constant 12 : i32
    %cst_167 = arith.constant 1.000000e+00 : f32
    %478 = vector.broadcast %cst_167 : f32 to vector<8x32xf32>
    %479 = arith.cmpf ogt, %448, %478 : vector<8x32xf32>
    %480 = arith.extui %479 : vector<8x32xi1> to vector<8x32xi32>
    %481 = arith.sitofp %480 : vector<8x32xi32> to vector<8x32xf32>
    %cst_168 = arith.constant 0.899999976 : f32
    %482 = vector.broadcast %cst_168 : f32 to vector<8x32xf32>
    %483 = arith.mulf %482, %448 : vector<8x32xf32>
    %484 = arith.addf %483, %7 : vector<8x32xf32>
    %cst_169 = arith.constant 1.000000e+00 : f32
    %485 = vector.broadcast %cst_169 : f32 to vector<8x32xf32>
    %486 = arith.mulf %481, %485 : vector<8x32xf32>
    %487 = arith.subf %484, %486 : vector<8x32xf32>
    %cst_170 = arith.constant 1.000000e+00 : f32
    %488 = vector.broadcast %cst_170 : f32 to vector<8x32xf32>
    %489 = arith.cmpf ogt, %487, %488 : vector<8x32xf32>
    %490 = arith.extui %489 : vector<8x32xi1> to vector<8x32xi32>
    %491 = arith.sitofp %490 : vector<8x32xi32> to vector<8x32xf32>
    %cst_171 = arith.constant dense<0.000000e+00> : vector<8x16xf32>
    %492 = tpu.matmul %491, %1, %cst_171 {dimension_numbers = #tpu.dot_dimension_numbers<[1], [0], [0], [1], [0, 0, 1, 1], [], []>} : vector<8x32xf32>, vector<32x16xf32>, vector<8x16xf32> -> vector<8x16xf32>
    %493 = vector.broadcast %2 : vector<1x16xf32> to vector<8x16xf32>
    %494 = arith.addf %492, %493 : vector<8x16xf32>
    %cst_172 = arith.constant 1.000000e+00 : f32
    %495 = vector.broadcast %cst_172 : f32 to vector<8x16xf32>
    %496 = arith.cmpf ogt, %465, %495 : vector<8x16xf32>
    %497 = arith.extui %496 : vector<8x16xi1> to vector<8x16xi32>
    %498 = arith.sitofp %497 : vector<8x16xi32> to vector<8x16xf32>
    %cst_173 = arith.constant 0.899999976 : f32
    %499 = vector.broadcast %cst_173 : f32 to vector<8x16xf32>
    %500 = arith.mulf %499, %465 : vector<8x16xf32>
    %501 = arith.addf %500, %494 : vector<8x16xf32>
    %cst_174 = arith.constant 1.000000e+00 : f32
    %502 = vector.broadcast %cst_174 : f32 to vector<8x16xf32>
    %503 = arith.mulf %498, %502 : vector<8x16xf32>
    %504 = arith.subf %501, %503 : vector<8x16xf32>
    %cst_175 = arith.constant 1.000000e+00 : f32
    %505 = vector.broadcast %cst_175 : f32 to vector<8x16xf32>
    %506 = arith.cmpf ogt, %504, %505 : vector<8x16xf32>
    %507 = arith.extui %506 : vector<8x16xi1> to vector<8x16xi32>
    %508 = arith.sitofp %507 : vector<8x16xi32> to vector<8x16xf32>
    %509 = arith.index_cast %c12_i32 : i32 to index
    %c0_176 = arith.constant 0 : index
    %c0_177 = arith.constant 0 : index
    %510 = vector.load %arg5[%509, %c0_176, %c0_177] : memref<25x8x16xf32, #tpu.memory_space<vmem>>, vector<1x8x16xf32>
    %511 = vector.shape_cast %510 : vector<1x8x16xf32> to vector<8x16xf32>
    %512 = vector.shape_cast %508 : vector<8x16xf32> to vector<1x8x16xf32>
    tpu.vector_store %arg5[%509, %c0_176, %c0_177], %512 {strides = array<i32>} : memref<25x8x16xf32, #tpu.memory_space<vmem>>, vector<1x8x16xf32>,
    %513 = arith.index_cast %c12_i32 : i32 to index
    %c0_178 = arith.constant 0 : index
    %c0_179 = arith.constant 0 : index
    %514 = vector.load %arg6[%513, %c0_178, %c0_179] : memref<25x8x16xf32, #tpu.memory_space<vmem>>, vector<1x8x16xf32>
    %515 = vector.shape_cast %514 : vector<1x8x16xf32> to vector<8x16xf32>
    %516 = vector.shape_cast %504 : vector<8x16xf32> to vector<1x8x16xf32>
    tpu.vector_store %arg6[%513, %c0_178, %c0_179], %516 {strides = array<i32>} : memref<25x8x16xf32, #tpu.memory_space<vmem>>, vector<1x8x16xf32>,
    %c13_i32 = arith.constant 13 : i32
    %cst_180 = arith.constant 1.000000e+00 : f32
    %517 = vector.broadcast %cst_180 : f32 to vector<8x32xf32>
    %518 = arith.cmpf ogt, %487, %517 : vector<8x32xf32>
    %519 = arith.extui %518 : vector<8x32xi1> to vector<8x32xi32>
    %520 = arith.sitofp %519 : vector<8x32xi32> to vector<8x32xf32>
    %cst_181 = arith.constant 0.899999976 : f32
    %521 = vector.broadcast %cst_181 : f32 to vector<8x32xf32>
    %522 = arith.mulf %521, %487 : vector<8x32xf32>
    %523 = arith.addf %522, %7 : vector<8x32xf32>
    %cst_182 = arith.constant 1.000000e+00 : f32
    %524 = vector.broadcast %cst_182 : f32 to vector<8x32xf32>
    %525 = arith.mulf %520, %524 : vector<8x32xf32>
    %526 = arith.subf %523, %525 : vector<8x32xf32>
    %cst_183 = arith.constant 1.000000e+00 : f32
    %527 = vector.broadcast %cst_183 : f32 to vector<8x32xf32>
    %528 = arith.cmpf ogt, %526, %527 : vector<8x32xf32>
    %529 = arith.extui %528 : vector<8x32xi1> to vector<8x32xi32>
    %530 = arith.sitofp %529 : vector<8x32xi32> to vector<8x32xf32>
    %cst_184 = arith.constant dense<0.000000e+00> : vector<8x16xf32>
    %531 = tpu.matmul %530, %1, %cst_184 {dimension_numbers = #tpu.dot_dimension_numbers<[1], [0], [0], [1], [0, 0, 1, 1], [], []>} : vector<8x32xf32>, vector<32x16xf32>, vector<8x16xf32> -> vector<8x16xf32>
    %532 = vector.broadcast %2 : vector<1x16xf32> to vector<8x16xf32>
    %533 = arith.addf %531, %532 : vector<8x16xf32>
    %cst_185 = arith.constant 1.000000e+00 : f32
    %534 = vector.broadcast %cst_185 : f32 to vector<8x16xf32>
    %535 = arith.cmpf ogt, %504, %534 : vector<8x16xf32>
    %536 = arith.extui %535 : vector<8x16xi1> to vector<8x16xi32>
    %537 = arith.sitofp %536 : vector<8x16xi32> to vector<8x16xf32>
    %cst_186 = arith.constant 0.899999976 : f32
    %538 = vector.broadcast %cst_186 : f32 to vector<8x16xf32>
    %539 = arith.mulf %538, %504 : vector<8x16xf32>
    %540 = arith.addf %539, %533 : vector<8x16xf32>
    %cst_187 = arith.constant 1.000000e+00 : f32
    %541 = vector.broadcast %cst_187 : f32 to vector<8x16xf32>
    %542 = arith.mulf %537, %541 : vector<8x16xf32>
    %543 = arith.subf %540, %542 : vector<8x16xf32>
    %cst_188 = arith.constant 1.000000e+00 : f32
    %544 = vector.broadcast %cst_188 : f32 to vector<8x16xf32>
    %545 = arith.cmpf ogt, %543, %544 : vector<8x16xf32>
    %546 = arith.extui %545 : vector<8x16xi1> to vector<8x16xi32>
    %547 = arith.sitofp %546 : vector<8x16xi32> to vector<8x16xf32>
    %548 = arith.index_cast %c13_i32 : i32 to index
    %c0_189 = arith.constant 0 : index
    %c0_190 = arith.constant 0 : index
    %549 = vector.load %arg5[%548, %c0_189, %c0_190] : memref<25x8x16xf32, #tpu.memory_space<vmem>>, vector<1x8x16xf32>
    %550 = vector.shape_cast %549 : vector<1x8x16xf32> to vector<8x16xf32>
    %551 = vector.shape_cast %547 : vector<8x16xf32> to vector<1x8x16xf32>
    tpu.vector_store %arg5[%548, %c0_189, %c0_190], %551 {strides = array<i32>} : memref<25x8x16xf32, #tpu.memory_space<vmem>>, vector<1x8x16xf32>,
    %552 = arith.index_cast %c13_i32 : i32 to index
    %c0_191 = arith.constant 0 : index
    %c0_192 = arith.constant 0 : index
    %553 = vector.load %arg6[%552, %c0_191, %c0_192] : memref<25x8x16xf32, #tpu.memory_space<vmem>>, vector<1x8x16xf32>
    %554 = vector.shape_cast %553 : vector<1x8x16xf32> to vector<8x16xf32>
    %555 = vector.shape_cast %543 : vector<8x16xf32> to vector<1x8x16xf32>
    tpu.vector_store %arg6[%552, %c0_191, %c0_192], %555 {strides = array<i32>} : memref<25x8x16xf32, #tpu.memory_space<vmem>>, vector<1x8x16xf32>,
    %c14_i32 = arith.constant 14 : i32
    %cst_193 = arith.constant 1.000000e+00 : f32
    %556 = vector.broadcast %cst_193 : f32 to vector<8x32xf32>
    %557 = arith.cmpf ogt, %526, %556 : vector<8x32xf32>
    %558 = arith.extui %557 : vector<8x32xi1> to vector<8x32xi32>
    %559 = arith.sitofp %558 : vector<8x32xi32> to vector<8x32xf32>
    %cst_194 = arith.constant 0.899999976 : f32
    %560 = vector.broadcast %cst_194 : f32 to vector<8x32xf32>
    %561 = arith.mulf %560, %526 : vector<8x32xf32>
    %562 = arith.addf %561, %7 : vector<8x32xf32>
    %cst_195 = arith.constant 1.000000e+00 : f32
    %563 = vector.broadcast %cst_195 : f32 to vector<8x32xf32>
    %564 = arith.mulf %559, %563 : vector<8x32xf32>
    %565 = arith.subf %562, %564 : vector<8x32xf32>
    %cst_196 = arith.constant 1.000000e+00 : f32
    %566 = vector.broadcast %cst_196 : f32 to vector<8x32xf32>
    %567 = arith.cmpf ogt, %565, %566 : vector<8x32xf32>
    %568 = arith.extui %567 : vector<8x32xi1> to vector<8x32xi32>
    %569 = arith.sitofp %568 : vector<8x32xi32> to vector<8x32xf32>
    %cst_197 = arith.constant dense<0.000000e+00> : vector<8x16xf32>
    %570 = tpu.matmul %569, %1, %cst_197 {dimension_numbers = #tpu.dot_dimension_numbers<[1], [0], [0], [1], [0, 0, 1, 1], [], []>} : vector<8x32xf32>, vector<32x16xf32>, vector<8x16xf32> -> vector<8x16xf32>
    %571 = vector.broadcast %2 : vector<1x16xf32> to vector<8x16xf32>
    %572 = arith.addf %570, %571 : vector<8x16xf32>
    %cst_198 = arith.constant 1.000000e+00 : f32
    %573 = vector.broadcast %cst_198 : f32 to vector<8x16xf32>
    %574 = arith.cmpf ogt, %543, %573 : vector<8x16xf32>
    %575 = arith.extui %574 : vector<8x16xi1> to vector<8x16xi32>
    %576 = arith.sitofp %575 : vector<8x16xi32> to vector<8x16xf32>
    %cst_199 = arith.constant 0.899999976 : f32
    %577 = vector.broadcast %cst_199 : f32 to vector<8x16xf32>
    %578 = arith.mulf %577, %543 : vector<8x16xf32>
    %579 = arith.addf %578, %572 : vector<8x16xf32>
    %cst_200 = arith.constant 1.000000e+00 : f32
    %580 = vector.broadcast %cst_200 : f32 to vector<8x16xf32>
    %581 = arith.mulf %576, %580 : vector<8x16xf32>
    %582 = arith.subf %579, %581 : vector<8x16xf32>
    %cst_201 = arith.constant 1.000000e+00 : f32
    %583 = vector.broadcast %cst_201 : f32 to vector<8x16xf32>
    %584 = arith.cmpf ogt, %582, %583 : vector<8x16xf32>
    %585 = arith.extui %584 : vector<8x16xi1> to vector<8x16xi32>
    %586 = arith.sitofp %585 : vector<8x16xi32> to vector<8x16xf32>
    %587 = arith.index_cast %c14_i32 : i32 to index
    %c0_202 = arith.constant 0 : index
    %c0_203 = arith.constant 0 : index
    %588 = vector.load %arg5[%587, %c0_202, %c0_203] : memref<25x8x16xf32, #tpu.memory_space<vmem>>, vector<1x8x16xf32>
    %589 = vector.shape_cast %588 : vector<1x8x16xf32> to vector<8x16xf32>
    %590 = vector.shape_cast %586 : vector<8x16xf32> to vector<1x8x16xf32>
    tpu.vector_store %arg5[%587, %c0_202, %c0_203], %590 {strides = array<i32>} : memref<25x8x16xf32, #tpu.memory_space<vmem>>, vector<1x8x16xf32>,
    %591 = arith.index_cast %c14_i32 : i32 to index
    %c0_204 = arith.constant 0 : index
    %c0_205 = arith.constant 0 : index
    %592 = vector.load %arg6[%591, %c0_204, %c0_205] : memref<25x8x16xf32, #tpu.memory_space<vmem>>, vector<1x8x16xf32>
    %593 = vector.shape_cast %592 : vector<1x8x16xf32> to vector<8x16xf32>
    %594 = vector.shape_cast %582 : vector<8x16xf32> to vector<1x8x16xf32>
    tpu.vector_store %arg6[%591, %c0_204, %c0_205], %594 {strides = array<i32>} : memref<25x8x16xf32, #tpu.memory_space<vmem>>, vector<1x8x16xf32>,
    %c15_i32 = arith.constant 15 : i32
    %cst_206 = arith.constant 1.000000e+00 : f32
    %595 = vector.broadcast %cst_206 : f32 to vector<8x32xf32>
    %596 = arith.cmpf ogt, %565, %595 : vector<8x32xf32>
    %597 = arith.extui %596 : vector<8x32xi1> to vector<8x32xi32>
    %598 = arith.sitofp %597 : vector<8x32xi32> to vector<8x32xf32>
    %cst_207 = arith.constant 0.899999976 : f32
    %599 = vector.broadcast %cst_207 : f32 to vector<8x32xf32>
    %600 = arith.mulf %599, %565 : vector<8x32xf32>
    %601 = arith.addf %600, %7 : vector<8x32xf32>
    %cst_208 = arith.constant 1.000000e+00 : f32
    %602 = vector.broadcast %cst_208 : f32 to vector<8x32xf32>
    %603 = arith.mulf %598, %602 : vector<8x32xf32>
    %604 = arith.subf %601, %603 : vector<8x32xf32>
    %cst_209 = arith.constant 1.000000e+00 : f32
    %605 = vector.broadcast %cst_209 : f32 to vector<8x32xf32>
    %606 = arith.cmpf ogt, %604, %605 : vector<8x32xf32>
    %607 = arith.extui %606 : vector<8x32xi1> to vector<8x32xi32>
    %608 = arith.sitofp %607 : vector<8x32xi32> to vector<8x32xf32>
    %cst_210 = arith.constant dense<0.000000e+00> : vector<8x16xf32>
    %609 = tpu.matmul %608, %1, %cst_210 {dimension_numbers = #tpu.dot_dimension_numbers<[1], [0], [0], [1], [0, 0, 1, 1], [], []>} : vector<8x32xf32>, vector<32x16xf32>, vector<8x16xf32> -> vector<8x16xf32>
    %610 = vector.broadcast %2 : vector<1x16xf32> to vector<8x16xf32>
    %611 = arith.addf %609, %610 : vector<8x16xf32>
    %cst_211 = arith.constant 1.000000e+00 : f32
    %612 = vector.broadcast %cst_211 : f32 to vector<8x16xf32>
    %613 = arith.cmpf ogt, %582, %612 : vector<8x16xf32>
    %614 = arith.extui %613 : vector<8x16xi1> to vector<8x16xi32>
    %615 = arith.sitofp %614 : vector<8x16xi32> to vector<8x16xf32>
    %cst_212 = arith.constant 0.899999976 : f32
    %616 = vector.broadcast %cst_212 : f32 to vector<8x16xf32>
    %617 = arith.mulf %616, %582 : vector<8x16xf32>
    %618 = arith.addf %617, %611 : vector<8x16xf32>
    %cst_213 = arith.constant 1.000000e+00 : f32
    %619 = vector.broadcast %cst_213 : f32 to vector<8x16xf32>
    %620 = arith.mulf %615, %619 : vector<8x16xf32>
    %621 = arith.subf %618, %620 : vector<8x16xf32>
    %cst_214 = arith.constant 1.000000e+00 : f32
    %622 = vector.broadcast %cst_214 : f32 to vector<8x16xf32>
    %623 = arith.cmpf ogt, %621, %622 : vector<8x16xf32>
    %624 = arith.extui %623 : vector<8x16xi1> to vector<8x16xi32>
    %625 = arith.sitofp %624 : vector<8x16xi32> to vector<8x16xf32>
    %626 = arith.index_cast %c15_i32 : i32 to index
    %c0_215 = arith.constant 0 : index
    %c0_216 = arith.constant 0 : index
    %627 = vector.load %arg5[%626, %c0_215, %c0_216] : memref<25x8x16xf32, #tpu.memory_space<vmem>>, vector<1x8x16xf32>
    %628 = vector.shape_cast %627 : vector<1x8x16xf32> to vector<8x16xf32>
    %629 = vector.shape_cast %625 : vector<8x16xf32> to vector<1x8x16xf32>
    tpu.vector_store %arg5[%626, %c0_215, %c0_216], %629 {strides = array<i32>} : memref<25x8x16xf32, #tpu.memory_space<vmem>>, vector<1x8x16xf32>,
    %630 = arith.index_cast %c15_i32 : i32 to index
    %c0_217 = arith.constant 0 : index
    %c0_218 = arith.constant 0 : index
    %631 = vector.load %arg6[%630, %c0_217, %c0_218] : memref<25x8x16xf32, #tpu.memory_space<vmem>>, vector<1x8x16xf32>
    %632 = vector.shape_cast %631 : vector<1x8x16xf32> to vector<8x16xf32>
    %633 = vector.shape_cast %621 : vector<8x16xf32> to vector<1x8x16xf32>
    tpu.vector_store %arg6[%630, %c0_217, %c0_218], %633 {strides = array<i32>} : memref<25x8x16xf32, #tpu.memory_space<vmem>>, vector<1x8x16xf32>,
    %c16_i32 = arith.constant 16 : i32
    %cst_219 = arith.constant 1.000000e+00 : f32
    %634 = vector.broadcast %cst_219 : f32 to vector<8x32xf32>
    %635 = arith.cmpf ogt, %604, %634 : vector<8x32xf32>
    %636 = arith.extui %635 : vector<8x32xi1> to vector<8x32xi32>
    %637 = arith.sitofp %636 : vector<8x32xi32> to vector<8x32xf32>
    %cst_220 = arith.constant 0.899999976 : f32
    %638 = vector.broadcast %cst_220 : f32 to vector<8x32xf32>
    %639 = arith.mulf %638, %604 : vector<8x32xf32>
    %640 = arith.addf %639, %7 : vector<8x32xf32>
    %cst_221 = arith.constant 1.000000e+00 : f32
    %641 = vector.broadcast %cst_221 : f32 to vector<8x32xf32>
    %642 = arith.mulf %637, %641 : vector<8x32xf32>
    %643 = arith.subf %640, %642 : vector<8x32xf32>
    %cst_222 = arith.constant 1.000000e+00 : f32
    %644 = vector.broadcast %cst_222 : f32 to vector<8x32xf32>
    %645 = arith.cmpf ogt, %643, %644 : vector<8x32xf32>
    %646 = arith.extui %645 : vector<8x32xi1> to vector<8x32xi32>
    %647 = arith.sitofp %646 : vector<8x32xi32> to vector<8x32xf32>
    %cst_223 = arith.constant dense<0.000000e+00> : vector<8x16xf32>
    %648 = tpu.matmul %647, %1, %cst_223 {dimension_numbers = #tpu.dot_dimension_numbers<[1], [0], [0], [1], [0, 0, 1, 1], [], []>} : vector<8x32xf32>, vector<32x16xf32>, vector<8x16xf32> -> vector<8x16xf32>
    %649 = vector.broadcast %2 : vector<1x16xf32> to vector<8x16xf32>
    %650 = arith.addf %648, %649 : vector<8x16xf32>
    %cst_224 = arith.constant 1.000000e+00 : f32
    %651 = vector.broadcast %cst_224 : f32 to vector<8x16xf32>
    %652 = arith.cmpf ogt, %621, %651 : vector<8x16xf32>
    %653 = arith.extui %652 : vector<8x16xi1> to vector<8x16xi32>
    %654 = arith.sitofp %653 : vector<8x16xi32> to vector<8x16xf32>
    %cst_225 = arith.constant 0.899999976 : f32
    %655 = vector.broadcast %cst_225 : f32 to vector<8x16xf32>
    %656 = arith.mulf %655, %621 : vector<8x16xf32>
    %657 = arith.addf %656, %650 : vector<8x16xf32>
    %cst_226 = arith.constant 1.000000e+00 : f32
    %658 = vector.broadcast %cst_226 : f32 to vector<8x16xf32>
    %659 = arith.mulf %654, %658 : vector<8x16xf32>
    %660 = arith.subf %657, %659 : vector<8x16xf32>
    %cst_227 = arith.constant 1.000000e+00 : f32
    %661 = vector.broadcast %cst_227 : f32 to vector<8x16xf32>
    %662 = arith.cmpf ogt, %660, %661 : vector<8x16xf32>
    %663 = arith.extui %662 : vector<8x16xi1> to vector<8x16xi32>
    %664 = arith.sitofp %663 : vector<8x16xi32> to vector<8x16xf32>
    %665 = arith.index_cast %c16_i32 : i32 to index
    %c0_228 = arith.constant 0 : index
    %c0_229 = arith.constant 0 : index
    %666 = vector.load %arg5[%665, %c0_228, %c0_229] : memref<25x8x16xf32, #tpu.memory_space<vmem>>, vector<1x8x16xf32>
    %667 = vector.shape_cast %666 : vector<1x8x16xf32> to vector<8x16xf32>
    %668 = vector.shape_cast %664 : vector<8x16xf32> to vector<1x8x16xf32>
    tpu.vector_store %arg5[%665, %c0_228, %c0_229], %668 {strides = array<i32>} : memref<25x8x16xf32, #tpu.memory_space<vmem>>, vector<1x8x16xf32>,
    %669 = arith.index_cast %c16_i32 : i32 to index
    %c0_230 = arith.constant 0 : index
    %c0_231 = arith.constant 0 : index
    %670 = vector.load %arg6[%669, %c0_230, %c0_231] : memref<25x8x16xf32, #tpu.memory_space<vmem>>, vector<1x8x16xf32>
    %671 = vector.shape_cast %670 : vector<1x8x16xf32> to vector<8x16xf32>
    %672 = vector.shape_cast %660 : vector<8x16xf32> to vector<1x8x16xf32>
    tpu.vector_store %arg6[%669, %c0_230, %c0_231], %672 {strides = array<i32>} : memref<25x8x16xf32, #tpu.memory_space<vmem>>, vector<1x8x16xf32>,
    %c17_i32 = arith.constant 17 : i32
    %cst_232 = arith.constant 1.000000e+00 : f32
    %673 = vector.broadcast %cst_232 : f32 to vector<8x32xf32>
    %674 = arith.cmpf ogt, %643, %673 : vector<8x32xf32>
    %675 = arith.extui %674 : vector<8x32xi1> to vector<8x32xi32>
    %676 = arith.sitofp %675 : vector<8x32xi32> to vector<8x32xf32>
    %cst_233 = arith.constant 0.899999976 : f32
    %677 = vector.broadcast %cst_233 : f32 to vector<8x32xf32>
    %678 = arith.mulf %677, %643 : vector<8x32xf32>
    %679 = arith.addf %678, %7 : vector<8x32xf32>
    %cst_234 = arith.constant 1.000000e+00 : f32
    %680 = vector.broadcast %cst_234 : f32 to vector<8x32xf32>
    %681 = arith.mulf %676, %680 : vector<8x32xf32>
    %682 = arith.subf %679, %681 : vector<8x32xf32>
    %cst_235 = arith.constant 1.000000e+00 : f32
    %683 = vector.broadcast %cst_235 : f32 to vector<8x32xf32>
    %684 = arith.cmpf ogt, %682, %683 : vector<8x32xf32>
    %685 = arith.extui %684 : vector<8x32xi1> to vector<8x32xi32>
    %686 = arith.sitofp %685 : vector<8x32xi32> to vector<8x32xf32>
    %cst_236 = arith.constant dense<0.000000e+00> : vector<8x16xf32>
    %687 = tpu.matmul %686, %1, %cst_236 {dimension_numbers = #tpu.dot_dimension_numbers<[1], [0], [0], [1], [0, 0, 1, 1], [], []>} : vector<8x32xf32>, vector<32x16xf32>, vector<8x16xf32> -> vector<8x16xf32>
    %688 = vector.broadcast %2 : vector<1x16xf32> to vector<8x16xf32>
    %689 = arith.addf %687, %688 : vector<8x16xf32>
    %cst_237 = arith.constant 1.000000e+00 : f32
    %690 = vector.broadcast %cst_237 : f32 to vector<8x16xf32>
    %691 = arith.cmpf ogt, %660, %690 : vector<8x16xf32>
    %692 = arith.extui %691 : vector<8x16xi1> to vector<8x16xi32>
    %693 = arith.sitofp %692 : vector<8x16xi32> to vector<8x16xf32>
    %cst_238 = arith.constant 0.899999976 : f32
    %694 = vector.broadcast %cst_238 : f32 to vector<8x16xf32>
    %695 = arith.mulf %694, %660 : vector<8x16xf32>
    %696 = arith.addf %695, %689 : vector<8x16xf32>
    %cst_239 = arith.constant 1.000000e+00 : f32
    %697 = vector.broadcast %cst_239 : f32 to vector<8x16xf32>
    %698 = arith.mulf %693, %697 : vector<8x16xf32>
    %699 = arith.subf %696, %698 : vector<8x16xf32>
    %cst_240 = arith.constant 1.000000e+00 : f32
    %700 = vector.broadcast %cst_240 : f32 to vector<8x16xf32>
    %701 = arith.cmpf ogt, %699, %700 : vector<8x16xf32>
    %702 = arith.extui %701 : vector<8x16xi1> to vector<8x16xi32>
    %703 = arith.sitofp %702 : vector<8x16xi32> to vector<8x16xf32>
    %704 = arith.index_cast %c17_i32 : i32 to index
    %c0_241 = arith.constant 0 : index
    %c0_242 = arith.constant 0 : index
    %705 = vector.load %arg5[%704, %c0_241, %c0_242] : memref<25x8x16xf32, #tpu.memory_space<vmem>>, vector<1x8x16xf32>
    %706 = vector.shape_cast %705 : vector<1x8x16xf32> to vector<8x16xf32>
    %707 = vector.shape_cast %703 : vector<8x16xf32> to vector<1x8x16xf32>
    tpu.vector_store %arg5[%704, %c0_241, %c0_242], %707 {strides = array<i32>} : memref<25x8x16xf32, #tpu.memory_space<vmem>>, vector<1x8x16xf32>,
    %708 = arith.index_cast %c17_i32 : i32 to index
    %c0_243 = arith.constant 0 : index
    %c0_244 = arith.constant 0 : index
    %709 = vector.load %arg6[%708, %c0_243, %c0_244] : memref<25x8x16xf32, #tpu.memory_space<vmem>>, vector<1x8x16xf32>
    %710 = vector.shape_cast %709 : vector<1x8x16xf32> to vector<8x16xf32>
    %711 = vector.shape_cast %699 : vector<8x16xf32> to vector<1x8x16xf32>
    tpu.vector_store %arg6[%708, %c0_243, %c0_244], %711 {strides = array<i32>} : memref<25x8x16xf32, #tpu.memory_space<vmem>>, vector<1x8x16xf32>,
    %c18_i32 = arith.constant 18 : i32
    %cst_245 = arith.constant 1.000000e+00 : f32
    %712 = vector.broadcast %cst_245 : f32 to vector<8x32xf32>
    %713 = arith.cmpf ogt, %682, %712 : vector<8x32xf32>
    %714 = arith.extui %713 : vector<8x32xi1> to vector<8x32xi32>
    %715 = arith.sitofp %714 : vector<8x32xi32> to vector<8x32xf32>
    %cst_246 = arith.constant 0.899999976 : f32
    %716 = vector.broadcast %cst_246 : f32 to vector<8x32xf32>
    %717 = arith.mulf %716, %682 : vector<8x32xf32>
    %718 = arith.addf %717, %7 : vector<8x32xf32>
    %cst_247 = arith.constant 1.000000e+00 : f32
    %719 = vector.broadcast %cst_247 : f32 to vector<8x32xf32>
    %720 = arith.mulf %715, %719 : vector<8x32xf32>
    %721 = arith.subf %718, %720 : vector<8x32xf32>
    %cst_248 = arith.constant 1.000000e+00 : f32
    %722 = vector.broadcast %cst_248 : f32 to vector<8x32xf32>
    %723 = arith.cmpf ogt, %721, %722 : vector<8x32xf32>
    %724 = arith.extui %723 : vector<8x32xi1> to vector<8x32xi32>
    %725 = arith.sitofp %724 : vector<8x32xi32> to vector<8x32xf32>
    %cst_249 = arith.constant dense<0.000000e+00> : vector<8x16xf32>
    %726 = tpu.matmul %725, %1, %cst_249 {dimension_numbers = #tpu.dot_dimension_numbers<[1], [0], [0], [1], [0, 0, 1, 1], [], []>} : vector<8x32xf32>, vector<32x16xf32>, vector<8x16xf32> -> vector<8x16xf32>
    %727 = vector.broadcast %2 : vector<1x16xf32> to vector<8x16xf32>
    %728 = arith.addf %726, %727 : vector<8x16xf32>
    %cst_250 = arith.constant 1.000000e+00 : f32
    %729 = vector.broadcast %cst_250 : f32 to vector<8x16xf32>
    %730 = arith.cmpf ogt, %699, %729 : vector<8x16xf32>
    %731 = arith.extui %730 : vector<8x16xi1> to vector<8x16xi32>
    %732 = arith.sitofp %731 : vector<8x16xi32> to vector<8x16xf32>
    %cst_251 = arith.constant 0.899999976 : f32
    %733 = vector.broadcast %cst_251 : f32 to vector<8x16xf32>
    %734 = arith.mulf %733, %699 : vector<8x16xf32>
    %735 = arith.addf %734, %728 : vector<8x16xf32>
    %cst_252 = arith.constant 1.000000e+00 : f32
    %736 = vector.broadcast %cst_252 : f32 to vector<8x16xf32>
    %737 = arith.mulf %732, %736 : vector<8x16xf32>
    %738 = arith.subf %735, %737 : vector<8x16xf32>
    %cst_253 = arith.constant 1.000000e+00 : f32
    %739 = vector.broadcast %cst_253 : f32 to vector<8x16xf32>
    %740 = arith.cmpf ogt, %738, %739 : vector<8x16xf32>
    %741 = arith.extui %740 : vector<8x16xi1> to vector<8x16xi32>
    %742 = arith.sitofp %741 : vector<8x16xi32> to vector<8x16xf32>
    %743 = arith.index_cast %c18_i32 : i32 to index
    %c0_254 = arith.constant 0 : index
    %c0_255 = arith.constant 0 : index
    %744 = vector.load %arg5[%743, %c0_254, %c0_255] : memref<25x8x16xf32, #tpu.memory_space<vmem>>, vector<1x8x16xf32>
    %745 = vector.shape_cast %744 : vector<1x8x16xf32> to vector<8x16xf32>
    %746 = vector.shape_cast %742 : vector<8x16xf32> to vector<1x8x16xf32>
    tpu.vector_store %arg5[%743, %c0_254, %c0_255], %746 {strides = array<i32>} : memref<25x8x16xf32, #tpu.memory_space<vmem>>, vector<1x8x16xf32>,
    %747 = arith.index_cast %c18_i32 : i32 to index
    %c0_256 = arith.constant 0 : index
    %c0_257 = arith.constant 0 : index
    %748 = vector.load %arg6[%747, %c0_256, %c0_257] : memref<25x8x16xf32, #tpu.memory_space<vmem>>, vector<1x8x16xf32>
    %749 = vector.shape_cast %748 : vector<1x8x16xf32> to vector<8x16xf32>
    %750 = vector.shape_cast %738 : vector<8x16xf32> to vector<1x8x16xf32>
    tpu.vector_store %arg6[%747, %c0_256, %c0_257], %750 {strides = array<i32>} : memref<25x8x16xf32, #tpu.memory_space<vmem>>, vector<1x8x16xf32>,
    %c19_i32 = arith.constant 19 : i32
    %cst_258 = arith.constant 1.000000e+00 : f32
    %751 = vector.broadcast %cst_258 : f32 to vector<8x32xf32>
    %752 = arith.cmpf ogt, %721, %751 : vector<8x32xf32>
    %753 = arith.extui %752 : vector<8x32xi1> to vector<8x32xi32>
    %754 = arith.sitofp %753 : vector<8x32xi32> to vector<8x32xf32>
    %cst_259 = arith.constant 0.899999976 : f32
    %755 = vector.broadcast %cst_259 : f32 to vector<8x32xf32>
    %756 = arith.mulf %755, %721 : vector<8x32xf32>
    %757 = arith.addf %756, %7 : vector<8x32xf32>
    %cst_260 = arith.constant 1.000000e+00 : f32
    %758 = vector.broadcast %cst_260 : f32 to vector<8x32xf32>
    %759 = arith.mulf %754, %758 : vector<8x32xf32>
    %760 = arith.subf %757, %759 : vector<8x32xf32>
    %cst_261 = arith.constant 1.000000e+00 : f32
    %761 = vector.broadcast %cst_261 : f32 to vector<8x32xf32>
    %762 = arith.cmpf ogt, %760, %761 : vector<8x32xf32>
    %763 = arith.extui %762 : vector<8x32xi1> to vector<8x32xi32>
    %764 = arith.sitofp %763 : vector<8x32xi32> to vector<8x32xf32>
    %cst_262 = arith.constant dense<0.000000e+00> : vector<8x16xf32>
    %765 = tpu.matmul %764, %1, %cst_262 {dimension_numbers = #tpu.dot_dimension_numbers<[1], [0], [0], [1], [0, 0, 1, 1], [], []>} : vector<8x32xf32>, vector<32x16xf32>, vector<8x16xf32> -> vector<8x16xf32>
    %766 = vector.broadcast %2 : vector<1x16xf32> to vector<8x16xf32>
    %767 = arith.addf %765, %766 : vector<8x16xf32>
    %cst_263 = arith.constant 1.000000e+00 : f32
    %768 = vector.broadcast %cst_263 : f32 to vector<8x16xf32>
    %769 = arith.cmpf ogt, %738, %768 : vector<8x16xf32>
    %770 = arith.extui %769 : vector<8x16xi1> to vector<8x16xi32>
    %771 = arith.sitofp %770 : vector<8x16xi32> to vector<8x16xf32>
    %cst_264 = arith.constant 0.899999976 : f32
    %772 = vector.broadcast %cst_264 : f32 to vector<8x16xf32>
    %773 = arith.mulf %772, %738 : vector<8x16xf32>
    %774 = arith.addf %773, %767 : vector<8x16xf32>
    %cst_265 = arith.constant 1.000000e+00 : f32
    %775 = vector.broadcast %cst_265 : f32 to vector<8x16xf32>
    %776 = arith.mulf %771, %775 : vector<8x16xf32>
    %777 = arith.subf %774, %776 : vector<8x16xf32>
    %cst_266 = arith.constant 1.000000e+00 : f32
    %778 = vector.broadcast %cst_266 : f32 to vector<8x16xf32>
    %779 = arith.cmpf ogt, %777, %778 : vector<8x16xf32>
    %780 = arith.extui %779 : vector<8x16xi1> to vector<8x16xi32>
    %781 = arith.sitofp %780 : vector<8x16xi32> to vector<8x16xf32>
    %782 = arith.index_cast %c19_i32 : i32 to index
    %c0_267 = arith.constant 0 : index
    %c0_268 = arith.constant 0 : index
    %783 = vector.load %arg5[%782, %c0_267, %c0_268] : memref<25x8x16xf32, #tpu.memory_space<vmem>>, vector<1x8x16xf32>
    %784 = vector.shape_cast %783 : vector<1x8x16xf32> to vector<8x16xf32>
    %785 = vector.shape_cast %781 : vector<8x16xf32> to vector<1x8x16xf32>
    tpu.vector_store %arg5[%782, %c0_267, %c0_268], %785 {strides = array<i32>} : memref<25x8x16xf32, #tpu.memory_space<vmem>>, vector<1x8x16xf32>,
    %786 = arith.index_cast %c19_i32 : i32 to index
    %c0_269 = arith.constant 0 : index
    %c0_270 = arith.constant 0 : index
    %787 = vector.load %arg6[%786, %c0_269, %c0_270] : memref<25x8x16xf32, #tpu.memory_space<vmem>>, vector<1x8x16xf32>
    %788 = vector.shape_cast %787 : vector<1x8x16xf32> to vector<8x16xf32>
    %789 = vector.shape_cast %777 : vector<8x16xf32> to vector<1x8x16xf32>
    tpu.vector_store %arg6[%786, %c0_269, %c0_270], %789 {strides = array<i32>} : memref<25x8x16xf32, #tpu.memory_space<vmem>>, vector<1x8x16xf32>,
    %c20_i32 = arith.constant 20 : i32
    %cst_271 = arith.constant 1.000000e+00 : f32
    %790 = vector.broadcast %cst_271 : f32 to vector<8x32xf32>
    %791 = arith.cmpf ogt, %760, %790 : vector<8x32xf32>
    %792 = arith.extui %791 : vector<8x32xi1> to vector<8x32xi32>
    %793 = arith.sitofp %792 : vector<8x32xi32> to vector<8x32xf32>
    %cst_272 = arith.constant 0.899999976 : f32
    %794 = vector.broadcast %cst_272 : f32 to vector<8x32xf32>
    %795 = arith.mulf %794, %760 : vector<8x32xf32>
    %796 = arith.addf %795, %7 : vector<8x32xf32>
    %cst_273 = arith.constant 1.000000e+00 : f32
    %797 = vector.broadcast %cst_273 : f32 to vector<8x32xf32>
    %798 = arith.mulf %793, %797 : vector<8x32xf32>
    %799 = arith.subf %796, %798 : vector<8x32xf32>
    %cst_274 = arith.constant 1.000000e+00 : f32
    %800 = vector.broadcast %cst_274 : f32 to vector<8x32xf32>
    %801 = arith.cmpf ogt, %799, %800 : vector<8x32xf32>
    %802 = arith.extui %801 : vector<8x32xi1> to vector<8x32xi32>
    %803 = arith.sitofp %802 : vector<8x32xi32> to vector<8x32xf32>
    %cst_275 = arith.constant dense<0.000000e+00> : vector<8x16xf32>
    %804 = tpu.matmul %803, %1, %cst_275 {dimension_numbers = #tpu.dot_dimension_numbers<[1], [0], [0], [1], [0, 0, 1, 1], [], []>} : vector<8x32xf32>, vector<32x16xf32>, vector<8x16xf32> -> vector<8x16xf32>
    %805 = vector.broadcast %2 : vector<1x16xf32> to vector<8x16xf32>
    %806 = arith.addf %804, %805 : vector<8x16xf32>
    %cst_276 = arith.constant 1.000000e+00 : f32
    %807 = vector.broadcast %cst_276 : f32 to vector<8x16xf32>
    %808 = arith.cmpf ogt, %777, %807 : vector<8x16xf32>
    %809 = arith.extui %808 : vector<8x16xi1> to vector<8x16xi32>
    %810 = arith.sitofp %809 : vector<8x16xi32> to vector<8x16xf32>
    %cst_277 = arith.constant 0.899999976 : f32
    %811 = vector.broadcast %cst_277 : f32 to vector<8x16xf32>
    %812 = arith.mulf %811, %777 : vector<8x16xf32>
    %813 = arith.addf %812, %806 : vector<8x16xf32>
    %cst_278 = arith.constant 1.000000e+00 : f32
    %814 = vector.broadcast %cst_278 : f32 to vector<8x16xf32>
    %815 = arith.mulf %810, %814 : vector<8x16xf32>
    %816 = arith.subf %813, %815 : vector<8x16xf32>
    %cst_279 = arith.constant 1.000000e+00 : f32
    %817 = vector.broadcast %cst_279 : f32 to vector<8x16xf32>
    %818 = arith.cmpf ogt, %816, %817 : vector<8x16xf32>
    %819 = arith.extui %818 : vector<8x16xi1> to vector<8x16xi32>
    %820 = arith.sitofp %819 : vector<8x16xi32> to vector<8x16xf32>
    %821 = arith.index_cast %c20_i32 : i32 to index
    %c0_280 = arith.constant 0 : index
    %c0_281 = arith.constant 0 : index
    %822 = vector.load %arg5[%821, %c0_280, %c0_281] : memref<25x8x16xf32, #tpu.memory_space<vmem>>, vector<1x8x16xf32>
    %823 = vector.shape_cast %822 : vector<1x8x16xf32> to vector<8x16xf32>
    %824 = vector.shape_cast %820 : vector<8x16xf32> to vector<1x8x16xf32>
    tpu.vector_store %arg5[%821, %c0_280, %c0_281], %824 {strides = array<i32>} : memref<25x8x16xf32, #tpu.memory_space<vmem>>, vector<1x8x16xf32>,
    %825 = arith.index_cast %c20_i32 : i32 to index
    %c0_282 = arith.constant 0 : index
    %c0_283 = arith.constant 0 : index
    %826 = vector.load %arg6[%825, %c0_282, %c0_283] : memref<25x8x16xf32, #tpu.memory_space<vmem>>, vector<1x8x16xf32>
    %827 = vector.shape_cast %826 : vector<1x8x16xf32> to vector<8x16xf32>
    %828 = vector.shape_cast %816 : vector<8x16xf32> to vector<1x8x16xf32>
    tpu.vector_store %arg6[%825, %c0_282, %c0_283], %828 {strides = array<i32>} : memref<25x8x16xf32, #tpu.memory_space<vmem>>, vector<1x8x16xf32>,
    %c21_i32 = arith.constant 21 : i32
    %cst_284 = arith.constant 1.000000e+00 : f32
    %829 = vector.broadcast %cst_284 : f32 to vector<8x32xf32>
    %830 = arith.cmpf ogt, %799, %829 : vector<8x32xf32>
    %831 = arith.extui %830 : vector<8x32xi1> to vector<8x32xi32>
    %832 = arith.sitofp %831 : vector<8x32xi32> to vector<8x32xf32>
    %cst_285 = arith.constant 0.899999976 : f32
    %833 = vector.broadcast %cst_285 : f32 to vector<8x32xf32>
    %834 = arith.mulf %833, %799 : vector<8x32xf32>
    %835 = arith.addf %834, %7 : vector<8x32xf32>
    %cst_286 = arith.constant 1.000000e+00 : f32
    %836 = vector.broadcast %cst_286 : f32 to vector<8x32xf32>
    %837 = arith.mulf %832, %836 : vector<8x32xf32>
    %838 = arith.subf %835, %837 : vector<8x32xf32>
    %cst_287 = arith.constant 1.000000e+00 : f32
    %839 = vector.broadcast %cst_287 : f32 to vector<8x32xf32>
    %840 = arith.cmpf ogt, %838, %839 : vector<8x32xf32>
    %841 = arith.extui %840 : vector<8x32xi1> to vector<8x32xi32>
    %842 = arith.sitofp %841 : vector<8x32xi32> to vector<8x32xf32>
    %cst_288 = arith.constant dense<0.000000e+00> : vector<8x16xf32>
    %843 = tpu.matmul %842, %1, %cst_288 {dimension_numbers = #tpu.dot_dimension_numbers<[1], [0], [0], [1], [0, 0, 1, 1], [], []>} : vector<8x32xf32>, vector<32x16xf32>, vector<8x16xf32> -> vector<8x16xf32>
    %844 = vector.broadcast %2 : vector<1x16xf32> to vector<8x16xf32>
    %845 = arith.addf %843, %844 : vector<8x16xf32>
    %cst_289 = arith.constant 1.000000e+00 : f32
    %846 = vector.broadcast %cst_289 : f32 to vector<8x16xf32>
    %847 = arith.cmpf ogt, %816, %846 : vector<8x16xf32>
    %848 = arith.extui %847 : vector<8x16xi1> to vector<8x16xi32>
    %849 = arith.sitofp %848 : vector<8x16xi32> to vector<8x16xf32>
    %cst_290 = arith.constant 0.899999976 : f32
    %850 = vector.broadcast %cst_290 : f32 to vector<8x16xf32>
    %851 = arith.mulf %850, %816 : vector<8x16xf32>
    %852 = arith.addf %851, %845 : vector<8x16xf32>
    %cst_291 = arith.constant 1.000000e+00 : f32
    %853 = vector.broadcast %cst_291 : f32 to vector<8x16xf32>
    %854 = arith.mulf %849, %853 : vector<8x16xf32>
    %855 = arith.subf %852, %854 : vector<8x16xf32>
    %cst_292 = arith.constant 1.000000e+00 : f32
    %856 = vector.broadcast %cst_292 : f32 to vector<8x16xf32>
    %857 = arith.cmpf ogt, %855, %856 : vector<8x16xf32>
    %858 = arith.extui %857 : vector<8x16xi1> to vector<8x16xi32>
    %859 = arith.sitofp %858 : vector<8x16xi32> to vector<8x16xf32>
    %860 = arith.index_cast %c21_i32 : i32 to index
    %c0_293 = arith.constant 0 : index
    %c0_294 = arith.constant 0 : index
    %861 = vector.load %arg5[%860, %c0_293, %c0_294] : memref<25x8x16xf32, #tpu.memory_space<vmem>>, vector<1x8x16xf32>
    %862 = vector.shape_cast %861 : vector<1x8x16xf32> to vector<8x16xf32>
    %863 = vector.shape_cast %859 : vector<8x16xf32> to vector<1x8x16xf32>
    tpu.vector_store %arg5[%860, %c0_293, %c0_294], %863 {strides = array<i32>} : memref<25x8x16xf32, #tpu.memory_space<vmem>>, vector<1x8x16xf32>,
    %864 = arith.index_cast %c21_i32 : i32 to index
    %c0_295 = arith.constant 0 : index
    %c0_296 = arith.constant 0 : index
    %865 = vector.load %arg6[%864, %c0_295, %c0_296] : memref<25x8x16xf32, #tpu.memory_space<vmem>>, vector<1x8x16xf32>
    %866 = vector.shape_cast %865 : vector<1x8x16xf32> to vector<8x16xf32>
    %867 = vector.shape_cast %855 : vector<8x16xf32> to vector<1x8x16xf32>
    tpu.vector_store %arg6[%864, %c0_295, %c0_296], %867 {strides = array<i32>} : memref<25x8x16xf32, #tpu.memory_space<vmem>>, vector<1x8x16xf32>,
    %c22_i32 = arith.constant 22 : i32
    %cst_297 = arith.constant 1.000000e+00 : f32
    %868 = vector.broadcast %cst_297 : f32 to vector<8x32xf32>
    %869 = arith.cmpf ogt, %838, %868 : vector<8x32xf32>
    %870 = arith.extui %869 : vector<8x32xi1> to vector<8x32xi32>
    %871 = arith.sitofp %870 : vector<8x32xi32> to vector<8x32xf32>
    %cst_298 = arith.constant 0.899999976 : f32
    %872 = vector.broadcast %cst_298 : f32 to vector<8x32xf32>
    %873 = arith.mulf %872, %838 : vector<8x32xf32>
    %874 = arith.addf %873, %7 : vector<8x32xf32>
    %cst_299 = arith.constant 1.000000e+00 : f32
    %875 = vector.broadcast %cst_299 : f32 to vector<8x32xf32>
    %876 = arith.mulf %871, %875 : vector<8x32xf32>
    %877 = arith.subf %874, %876 : vector<8x32xf32>
    %cst_300 = arith.constant 1.000000e+00 : f32
    %878 = vector.broadcast %cst_300 : f32 to vector<8x32xf32>
    %879 = arith.cmpf ogt, %877, %878 : vector<8x32xf32>
    %880 = arith.extui %879 : vector<8x32xi1> to vector<8x32xi32>
    %881 = arith.sitofp %880 : vector<8x32xi32> to vector<8x32xf32>
    %cst_301 = arith.constant dense<0.000000e+00> : vector<8x16xf32>
    %882 = tpu.matmul %881, %1, %cst_301 {dimension_numbers = #tpu.dot_dimension_numbers<[1], [0], [0], [1], [0, 0, 1, 1], [], []>} : vector<8x32xf32>, vector<32x16xf32>, vector<8x16xf32> -> vector<8x16xf32>
    %883 = vector.broadcast %2 : vector<1x16xf32> to vector<8x16xf32>
    %884 = arith.addf %882, %883 : vector<8x16xf32>
    %cst_302 = arith.constant 1.000000e+00 : f32
    %885 = vector.broadcast %cst_302 : f32 to vector<8x16xf32>
    %886 = arith.cmpf ogt, %855, %885 : vector<8x16xf32>
    %887 = arith.extui %886 : vector<8x16xi1> to vector<8x16xi32>
    %888 = arith.sitofp %887 : vector<8x16xi32> to vector<8x16xf32>
    %cst_303 = arith.constant 0.899999976 : f32
    %889 = vector.broadcast %cst_303 : f32 to vector<8x16xf32>
    %890 = arith.mulf %889, %855 : vector<8x16xf32>
    %891 = arith.addf %890, %884 : vector<8x16xf32>
    %cst_304 = arith.constant 1.000000e+00 : f32
    %892 = vector.broadcast %cst_304 : f32 to vector<8x16xf32>
    %893 = arith.mulf %888, %892 : vector<8x16xf32>
    %894 = arith.subf %891, %893 : vector<8x16xf32>
    %cst_305 = arith.constant 1.000000e+00 : f32
    %895 = vector.broadcast %cst_305 : f32 to vector<8x16xf32>
    %896 = arith.cmpf ogt, %894, %895 : vector<8x16xf32>
    %897 = arith.extui %896 : vector<8x16xi1> to vector<8x16xi32>
    %898 = arith.sitofp %897 : vector<8x16xi32> to vector<8x16xf32>
    %899 = arith.index_cast %c22_i32 : i32 to index
    %c0_306 = arith.constant 0 : index
    %c0_307 = arith.constant 0 : index
    %900 = vector.load %arg5[%899, %c0_306, %c0_307] : memref<25x8x16xf32, #tpu.memory_space<vmem>>, vector<1x8x16xf32>
    %901 = vector.shape_cast %900 : vector<1x8x16xf32> to vector<8x16xf32>
    %902 = vector.shape_cast %898 : vector<8x16xf32> to vector<1x8x16xf32>
    tpu.vector_store %arg5[%899, %c0_306, %c0_307], %902 {strides = array<i32>} : memref<25x8x16xf32, #tpu.memory_space<vmem>>, vector<1x8x16xf32>,
    %903 = arith.index_cast %c22_i32 : i32 to index
    %c0_308 = arith.constant 0 : index
    %c0_309 = arith.constant 0 : index
    %904 = vector.load %arg6[%903, %c0_308, %c0_309] : memref<25x8x16xf32, #tpu.memory_space<vmem>>, vector<1x8x16xf32>
    %905 = vector.shape_cast %904 : vector<1x8x16xf32> to vector<8x16xf32>
    %906 = vector.shape_cast %894 : vector<8x16xf32> to vector<1x8x16xf32>
    tpu.vector_store %arg6[%903, %c0_308, %c0_309], %906 {strides = array<i32>} : memref<25x8x16xf32, #tpu.memory_space<vmem>>, vector<1x8x16xf32>,
    %c23_i32 = arith.constant 23 : i32
    %cst_310 = arith.constant 1.000000e+00 : f32
    %907 = vector.broadcast %cst_310 : f32 to vector<8x32xf32>
    %908 = arith.cmpf ogt, %877, %907 : vector<8x32xf32>
    %909 = arith.extui %908 : vector<8x32xi1> to vector<8x32xi32>
    %910 = arith.sitofp %909 : vector<8x32xi32> to vector<8x32xf32>
    %cst_311 = arith.constant 0.899999976 : f32
    %911 = vector.broadcast %cst_311 : f32 to vector<8x32xf32>
    %912 = arith.mulf %911, %877 : vector<8x32xf32>
    %913 = arith.addf %912, %7 : vector<8x32xf32>
    %cst_312 = arith.constant 1.000000e+00 : f32
    %914 = vector.broadcast %cst_312 : f32 to vector<8x32xf32>
    %915 = arith.mulf %910, %914 : vector<8x32xf32>
    %916 = arith.subf %913, %915 : vector<8x32xf32>
    %cst_313 = arith.constant 1.000000e+00 : f32
    %917 = vector.broadcast %cst_313 : f32 to vector<8x32xf32>
    %918 = arith.cmpf ogt, %916, %917 : vector<8x32xf32>
    %919 = arith.extui %918 : vector<8x32xi1> to vector<8x32xi32>
    %920 = arith.sitofp %919 : vector<8x32xi32> to vector<8x32xf32>
    %cst_314 = arith.constant dense<0.000000e+00> : vector<8x16xf32>
    %921 = tpu.matmul %920, %1, %cst_314 {dimension_numbers = #tpu.dot_dimension_numbers<[1], [0], [0], [1], [0, 0, 1, 1], [], []>} : vector<8x32xf32>, vector<32x16xf32>, vector<8x16xf32> -> vector<8x16xf32>
    %922 = vector.broadcast %2 : vector<1x16xf32> to vector<8x16xf32>
    %923 = arith.addf %921, %922 : vector<8x16xf32>
    %cst_315 = arith.constant 1.000000e+00 : f32
    %924 = vector.broadcast %cst_315 : f32 to vector<8x16xf32>
    %925 = arith.cmpf ogt, %894, %924 : vector<8x16xf32>
    %926 = arith.extui %925 : vector<8x16xi1> to vector<8x16xi32>
    %927 = arith.sitofp %926 : vector<8x16xi32> to vector<8x16xf32>
    %cst_316 = arith.constant 0.899999976 : f32
    %928 = vector.broadcast %cst_316 : f32 to vector<8x16xf32>
    %929 = arith.mulf %928, %894 : vector<8x16xf32>
    %930 = arith.addf %929, %923 : vector<8x16xf32>
    %cst_317 = arith.constant 1.000000e+00 : f32
    %931 = vector.broadcast %cst_317 : f32 to vector<8x16xf32>
    %932 = arith.mulf %927, %931 : vector<8x16xf32>
    %933 = arith.subf %930, %932 : vector<8x16xf32>
    %cst_318 = arith.constant 1.000000e+00 : f32
    %934 = vector.broadcast %cst_318 : f32 to vector<8x16xf32>
    %935 = arith.cmpf ogt, %933, %934 : vector<8x16xf32>
    %936 = arith.extui %935 : vector<8x16xi1> to vector<8x16xi32>
    %937 = arith.sitofp %936 : vector<8x16xi32> to vector<8x16xf32>
    %938 = arith.index_cast %c23_i32 : i32 to index
    %c0_319 = arith.constant 0 : index
    %c0_320 = arith.constant 0 : index
    %939 = vector.load %arg5[%938, %c0_319, %c0_320] : memref<25x8x16xf32, #tpu.memory_space<vmem>>, vector<1x8x16xf32>
    %940 = vector.shape_cast %939 : vector<1x8x16xf32> to vector<8x16xf32>
    %941 = vector.shape_cast %937 : vector<8x16xf32> to vector<1x8x16xf32>
    tpu.vector_store %arg5[%938, %c0_319, %c0_320], %941 {strides = array<i32>} : memref<25x8x16xf32, #tpu.memory_space<vmem>>, vector<1x8x16xf32>,
    %942 = arith.index_cast %c23_i32 : i32 to index
    %c0_321 = arith.constant 0 : index
    %c0_322 = arith.constant 0 : index
    %943 = vector.load %arg6[%942, %c0_321, %c0_322] : memref<25x8x16xf32, #tpu.memory_space<vmem>>, vector<1x8x16xf32>
    %944 = vector.shape_cast %943 : vector<1x8x16xf32> to vector<8x16xf32>
    %945 = vector.shape_cast %933 : vector<8x16xf32> to vector<1x8x16xf32>
    tpu.vector_store %arg6[%942, %c0_321, %c0_322], %945 {strides = array<i32>} : memref<25x8x16xf32, #tpu.memory_space<vmem>>, vector<1x8x16xf32>,
    %c24_i32 = arith.constant 24 : i32
    %cst_323 = arith.constant 1.000000e+00 : f32
    %946 = vector.broadcast %cst_323 : f32 to vector<8x32xf32>
    %947 = arith.cmpf ogt, %916, %946 : vector<8x32xf32>
    %948 = arith.extui %947 : vector<8x32xi1> to vector<8x32xi32>
    %949 = arith.sitofp %948 : vector<8x32xi32> to vector<8x32xf32>
    %cst_324 = arith.constant 0.899999976 : f32
    %950 = vector.broadcast %cst_324 : f32 to vector<8x32xf32>
    %951 = arith.mulf %950, %916 : vector<8x32xf32>
    %952 = arith.addf %951, %7 : vector<8x32xf32>
    %cst_325 = arith.constant 1.000000e+00 : f32
    %953 = vector.broadcast %cst_325 : f32 to vector<8x32xf32>
    %954 = arith.mulf %949, %953 : vector<8x32xf32>
    %955 = arith.subf %952, %954 : vector<8x32xf32>
    %cst_326 = arith.constant 1.000000e+00 : f32
    %956 = vector.broadcast %cst_326 : f32 to vector<8x32xf32>
    %957 = arith.cmpf ogt, %955, %956 : vector<8x32xf32>
    %958 = arith.extui %957 : vector<8x32xi1> to vector<8x32xi32>
    %959 = arith.sitofp %958 : vector<8x32xi32> to vector<8x32xf32>
    %cst_327 = arith.constant dense<0.000000e+00> : vector<8x16xf32>
    %960 = tpu.matmul %959, %1, %cst_327 {dimension_numbers = #tpu.dot_dimension_numbers<[1], [0], [0], [1], [0, 0, 1, 1], [], []>} : vector<8x32xf32>, vector<32x16xf32>, vector<8x16xf32> -> vector<8x16xf32>
    %961 = vector.broadcast %2 : vector<1x16xf32> to vector<8x16xf32>
    %962 = arith.addf %960, %961 : vector<8x16xf32>
    %cst_328 = arith.constant 1.000000e+00 : f32
    %963 = vector.broadcast %cst_328 : f32 to vector<8x16xf32>
    %964 = arith.cmpf ogt, %933, %963 : vector<8x16xf32>
    %965 = arith.extui %964 : vector<8x16xi1> to vector<8x16xi32>
    %966 = arith.sitofp %965 : vector<8x16xi32> to vector<8x16xf32>
    %cst_329 = arith.constant 0.899999976 : f32
    %967 = vector.broadcast %cst_329 : f32 to vector<8x16xf32>
    %968 = arith.mulf %967, %933 : vector<8x16xf32>
    %969 = arith.addf %968, %962 : vector<8x16xf32>
    %cst_330 = arith.constant 1.000000e+00 : f32
    %970 = vector.broadcast %cst_330 : f32 to vector<8x16xf32>
    %971 = arith.mulf %966, %970 : vector<8x16xf32>
    %972 = arith.subf %969, %971 : vector<8x16xf32>
    %cst_331 = arith.constant 1.000000e+00 : f32
    %973 = vector.broadcast %cst_331 : f32 to vector<8x16xf32>
    %974 = arith.cmpf ogt, %972, %973 : vector<8x16xf32>
    %975 = arith.extui %974 : vector<8x16xi1> to vector<8x16xi32>
    %976 = arith.sitofp %975 : vector<8x16xi32> to vector<8x16xf32>
    %977 = arith.index_cast %c24_i32 : i32 to index
    %c0_332 = arith.constant 0 : index
    %c0_333 = arith.constant 0 : index
    %978 = vector.load %arg5[%977, %c0_332, %c0_333] : memref<25x8x16xf32, #tpu.memory_space<vmem>>, vector<1x8x16xf32>
    %979 = vector.shape_cast %978 : vector<1x8x16xf32> to vector<8x16xf32>
    %980 = vector.shape_cast %976 : vector<8x16xf32> to vector<1x8x16xf32>
    tpu.vector_store %arg5[%977, %c0_332, %c0_333], %980 {strides = array<i32>} : memref<25x8x16xf32, #tpu.memory_space<vmem>>, vector<1x8x16xf32>,
    %981 = arith.index_cast %c24_i32 : i32 to index
    %c0_334 = arith.constant 0 : index
    %c0_335 = arith.constant 0 : index
    %982 = vector.load %arg6[%981, %c0_334, %c0_335] : memref<25x8x16xf32, #tpu.memory_space<vmem>>, vector<1x8x16xf32>
    %983 = vector.shape_cast %982 : vector<1x8x16xf32> to vector<8x16xf32>
    %984 = vector.shape_cast %972 : vector<8x16xf32> to vector<1x8x16xf32>
    tpu.vector_store %arg6[%981, %c0_334, %c0_335], %984 {strides = array<i32>} : memref<25x8x16xf32, #tpu.memory_space<vmem>>, vector<1x8x16xf32>,
    %c25_i32 = arith.constant 25 : i32
    return
  }
}

</mosaic_0001>

<llo_original>
// kernel: tpu_custom_call.1
$region0: #{tpu_custom_call.1}
  #allocation0 [shape = 'u32[]', space=smem, size = 0x4, offset = 0x4, fixed_abs, tag = 'smem constant byte address 0x4 - core index']
  #allocation1 [shape = 'u32[72,128]{1,0:T(1,128)}', space=vmem, size = 0x9000, scoped, tag = 'internal scratch']
  %s0 = inlined_call_operand.vmem [shape: f32[8,32], index: 0, kind: input, shape index: {}]
  %s1 = inlined_call_operand.vmem [shape: f32[32,32], index: 1, kind: input, shape index: {}]
  %s2 = inlined_call_operand.vmem [shape: f32[1,32], index: 2, kind: input, shape index: {}]
  %s3 = inlined_call_operand.vmem [shape: f32[32,16], index: 3, kind: input, shape index: {}]
  %s4 = inlined_call_operand.vmem [shape: f32[1,16], index: 4, kind: input, shape index: {}]
  %s5 = inlined_call_operand.vmem [shape: f32[25,8,16], index: 5, kind: output, shape index: {0}]
  %s6 = inlined_call_operand.vmem [shape: f32[25,8,16], index: 6, kind: output, shape index: {1}]
  %7 = xla_tuple %s5, %s6
  %s8 = sld [smem:[#allocation0]]
  $region38: #{tpu_custom_call.1} parent=0
    _
  %s10 = ssub.s32 1, %s8
  %s11 = scalar_select 0, %s10, %s8
  // Predicated region
  $region2: #{tpu_custom_call.1} parent=0 // pred_check
    _
  $region3: #{tpu_custom_call.1} parent=0 // pred_check_branch
    %13 = sbr.rel (0) target = $region5
  $region4: #{tpu_custom_call.1} parent=0 // pred_region
    _
  $region5: #{tpu_custom_call.1} parent=0 // pred_fallthru
    _
  // Predicated region
  $region6: #{tpu_custom_call.1} parent=0 // pred_check
    _
  $region7: #{tpu_custom_call.1} parent=0 // pred_check_branch
    %15 = sbr.rel (0) target = $region9
  $region8: #{tpu_custom_call.1} parent=0 // pred_region
    _
  $region9: #{tpu_custom_call.1} parent=0 // pred_fallthru
    _
  // Predicated region
  $region10: #{tpu_custom_call.1} parent=0 // pred_check
    _
  $region11: #{tpu_custom_call.1} parent=0 // pred_check_branch
    %17 = sbr.rel (0) target = $region13
  $region12: #{tpu_custom_call.1} parent=0 // pred_region
    _
  $region13: #{tpu_custom_call.1} parent=0 // pred_fallthru
    _
  // Predicated region
  $region14: #{tpu_custom_call.1} parent=0 // pred_check
    _
  $region15: #{tpu_custom_call.1} parent=0 // pred_check_branch
    %19 = sbr.rel (0) target = $region17
  $region16: #{tpu_custom_call.1} parent=0 // pred_region
    _
  $region17: #{tpu_custom_call.1} parent=0 // pred_fallthru
    _
  // Predicated region
  $region18: #{tpu_custom_call.1} parent=0 // pred_check
    _
  $region19: #{tpu_custom_call.1} parent=0 // pred_check_branch
    %21 = sbr.rel (0) target = $region21
  $region20: #{tpu_custom_call.1} parent=0 // pred_region
    _
  $region21: #{tpu_custom_call.1} parent=0 // pred_fallthru
    _
  %v22 = vld [vmem:[%s0] sm:$0xff]
  %v23 = vld [vmem:[%s3] sm:$0xff]
  %v24 = vld [vmem:[%s3 + $0x8] sm:$0xff]
  %v25 = vld [vmem:[%s3 + $0x10] sm:$0xff]
  %v26 = vld [vmem:[%s3 + $0x18] sm:$0xff]
  %v27 = vld [vmem:[%s4] sm:$0x1]
  %v28 = vld [vmem:[%s1] sm:$0xff]
  %v29 = vld [vmem:[%s1 + $0x8] sm:$0xff]
  %v30 = vld [vmem:[%s1 + $0x10] sm:$0xff]
  %v31 = vld [vmem:[%s1 + $0x18] sm:$0xff]
  %v32 = vld [vmem:[%s2] sm:$0x1]
  %v34 = vperm.slane %v32, 0
  %vm36 = vcmask 261120
  %v38 = vsel %vm36, %v22, 0
  %40 = vmatpush.msra.mxu0 0.0
  %41 = vmatpush.msra.mxu0 0.0
  %42 = vmatpush.msra.mxu0 0.0
  %43 = vmatpush.msra.mxu0 0.0
  %44 = vmatpush.msra.mxu0 0.0
  %45 = vmatpush.msra.mxu0 0.0
  %46 = vmatpush.msra.mxu0 0.0
  %47 = vmatpush.msra.mxu0 0.0
  %48 = vmatpush.msra.mxu0 0.0
  %49 = vmatpush.msra.mxu0 0.0
  %50 = vmatpush.msra.mxu0 0.0
  %51 = vmatpush.msra.mxu0 0.0
  %52 = vmatpush.msra.mxu0 %v31
  %53 = vmatpush.msra.mxu0 %v30
  %54 = vmatpush.msra.mxu0 %v29
  %55 = vmatpush.msra.mxu0 %v28
  %56 = vmatmul.f32.gmra.mxu0 %v38
  %v57 = vpop.f32.mrf.mxu0
  %v58 = vadd.f32 %v34, %v57
  %59 = vdwg.mxu0
  %vm60 = vcmp.gt.f32.partialorder 0.0, 1.0
  %v61 = vsel %vm60, 1, 0
  %v62 = vcvt.s32.f32 %v61
  %v63 = vadd.f32 %v58, 0.0
  %v64 = vsub.f32 %v63, %v62
  %vm65 = vcmp.gt.f32.partialorder %v64, 1.0
  %v66 = vsel %vm65, 1, 0
  %v67 = vcvt.s32.f32 %v66
  %v69 = vperm.slane %v27, 0
  %v72 = vsel %vm36, %v67, 0
  %74 = vmatpush.msra.mxu0 0.0
  %75 = vmatpush.msra.mxu0 0.0
  %76 = vmatpush.msra.mxu0 0.0
  %77 = vmatpush.msra.mxu0 0.0
  %78 = vmatpush.msra.mxu0 0.0
  %79 = vmatpush.msra.mxu0 0.0
  %80 = vmatpush.msra.mxu0 0.0
  %81 = vmatpush.msra.mxu0 0.0
  %82 = vmatpush.msra.mxu0 0.0
  %83 = vmatpush.msra.mxu0 0.0
  %84 = vmatpush.msra.mxu0 0.0
  %85 = vmatpush.msra.mxu0 0.0
  %86 = vmatpush.msra.mxu0 %v26
  %87 = vmatpush.msra.mxu0 %v25
  %88 = vmatpush.msra.mxu0 %v24
  %89 = vmatpush.msra.mxu0 %v23
  %90 = vmatmul.f32.gmra.mxu0 %v72
  %v91 = vpop.f32.mrf.mxu0
  %v92 = vadd.f32 %v69, %v91
  %93 = vdwg.mxu0
  %v94 = vadd.f32 %v92, 0.0
  %v95 = vsub.f32 %v94, %v62
  %vm96 = vcmp.gt.f32.partialorder %v95, 1.0
  %v97 = vsel %vm96, 1, 0
  %v98 = vcvt.s32.f32 %v97
  %vm99 = vcmask 130048
  %100 = vst.msk [vmem:[%s5] sm:$0xff] %vm99, %v98
  %101 = vst.msk [vmem:[%s6] sm:$0xff] %vm99, %v95
  %v102 = vmul.f32 %v64, 0.9
  %v103 = vadd.f32 %v102, %v58
  %v104 = vsub.f32 %v103, %v67
  %vm105 = vcmp.gt.f32.partialorder %v104, 1.0
  %v106 = vsel %vm105, 1, 0
  %v107 = vcvt.s32.f32 %v106
  %v109 = vsel %vm36, %v107, 0
  %111 = vmatpush.msra.mxu0 0.0
  %112 = vmatpush.msra.mxu0 0.0
  %113 = vmatpush.msra.mxu0 0.0
  %114 = vmatpush.msra.mxu0 0.0
  %115 = vmatpush.msra.mxu0 0.0
  %116 = vmatpush.msra.mxu0 0.0
  %117 = vmatpush.msra.mxu0 0.0
  %118 = vmatpush.msra.mxu0 0.0
  %119 = vmatpush.msra.mxu0 0.0
  %120 = vmatpush.msra.mxu0 0.0
  %121 = vmatpush.msra.mxu0 0.0
  %122 = vmatpush.msra.mxu0 0.0
  %123 = vmatpush.msra.mxu0 %v26
  %124 = vmatpush.msra.mxu0 %v25
  %125 = vmatpush.msra.mxu0 %v24
  %126 = vmatpush.msra.mxu0 %v23
  %127 = vmatmul.f32.gmra.mxu0 %v109
  %v128 = vpop.f32.mrf.mxu0
  %v129 = vadd.f32 %v69, %v128
  %130 = vdwg.mxu0
  %v131 = vmul.f32 %v95, 0.9
  %v132 = vadd.f32 %v131, %v129
  %v133 = vsub.f32 %v132, %v98
  %vm134 = vcmp.gt.f32.partialorder %v133, 1.0
  %v135 = vsel %vm134, 1, 0
  %v136 = vcvt.s32.f32 %v135
  %s137 = scalar_lea.vmem %s5, 8
  %138 = vst.msk [vmem:[%s137] sm:$0xff] %vm99, %v136
  %s139 = scalar_lea.vmem %s6, 8
  %140 = vst.msk [vmem:[%s139] sm:$0xff] %vm99, %v133
  %v141 = vmul.f32 %v104, 0.9
  %v142 = vadd.f32 %v141, %v58
  %v143 = vsub.f32 %v142, %v107
  %vm144 = vcmp.gt.f32.partialorder %v143, 1.0
  %v145 = vsel %vm144, 1, 0
  %v146 = vcvt.s32.f32 %v145
  %v148 = vsel %vm36, %v146, 0
  %150 = vmatpush.msra.mxu0 0.0
  %151 = vmatpush.msra.mxu0 0.0
  %152 = vmatpush.msra.mxu0 0.0
  %153 = vmatpush.msra.mxu0 0.0
  %154 = vmatpush.msra.mxu0 0.0
  %155 = vmatpush.msra.mxu0 0.0
  %156 = vmatpush.msra.mxu0 0.0
  %157 = vmatpush.msra.mxu0 0.0
  %158 = vmatpush.msra.mxu0 0.0
  %159 = vmatpush.msra.mxu0 0.0
  %160 = vmatpush.msra.mxu0 0.0
  %161 = vmatpush.msra.mxu0 0.0
  %162 = vmatpush.msra.mxu0 %v26
  %163 = vmatpush.msra.mxu0 %v25
  %164 = vmatpush.msra.mxu0 %v24
  %165 = vmatpush.msra.mxu0 %v23
  %166 = vmatmul.f32.gmra.mxu0 %v148
  %v167 = vpop.f32.mrf.mxu0
  %v168 = vadd.f32 %v69, %v167
  %169 = vdwg.mxu0
  %v170 = vmul.f32 %v133, 0.9
  %v171 = vadd.f32 %v170, %v168
  %v172 = vsub.f32 %v171, %v136
  %vm173 = vcmp.gt.f32.partialorder %v172, 1.0
  %v174 = vsel %vm173, 1, 0
  %v175 = vcvt.s32.f32 %v174
  %s176 = scalar_lea.vmem %s5, 16
  %177 = vst.msk [vmem:[%s176] sm:$0xff] %vm99, %v175
  %s178 = scalar_lea.vmem %s6, 16
  %179 = vst.msk [vmem:[%s178] sm:$0xff] %vm99, %v172
  %v180 = vmul.f32 %v143, 0.9
  %v181 = vadd.f32 %v180, %v58
  %v182 = vsub.f32 %v181, %v146
  %vm183 = vcmp.gt.f32.partialorder %v182, 1.0
  %v184 = vsel %vm183, 1, 0
  %v185 = vcvt.s32.f32 %v184
  %v187 = vsel %vm36, %v185, 0
  %189 = vmatpush.msra.mxu0 0.0
  %190 = vmatpush.msra.mxu0 0.0
  %191 = vmatpush.msra.mxu0 0.0
  %192 = vmatpush.msra.mxu0 0.0
  %193 = vmatpush.msra.mxu0 0.0
  %194 = vmatpush.msra.mxu0 0.0
  %195 = vmatpush.msra.mxu0 0.0
  %196 = vmatpush.msra.mxu0 0.0
  %197 = vmatpush.msra.mxu0 0.0
  %198 = vmatpush.msra.mxu0 0.0
  %199 = vmatpush.msra.mxu0 0.0
  %200 = vmatpush.msra.mxu0 0.0
  %201 = vmatpush.msra.mxu0 %v26
  %202 = vmatpush.msra.mxu0 %v25
  %203 = vmatpush.msra.mxu0 %v24
  %204 = vmatpush.msra.mxu0 %v23
  %205 = vmatmul.f32.gmra.mxu0 %v187
  %v206 = vpop.f32.mrf.mxu0
  %v207 = vadd.f32 %v69, %v206
  %208 = vdwg.mxu0
  %v209 = vmul.f32 %v172, 0.9
  %v210 = vadd.f32 %v209, %v207
  %v211 = vsub.f32 %v210, %v175
  %vm212 = vcmp.gt.f32.partialorder %v211, 1.0
  %v213 = vsel %vm212, 1, 0
  %v214 = vcvt.s32.f32 %v213
  %s215 = scalar_lea.vmem %s5, 24
  %216 = vst.msk [vmem:[%s215] sm:$0xff] %vm99, %v214
  %s217 = scalar_lea.vmem %s6, 24
  %218 = vst.msk [vmem:[%s217] sm:$0xff] %vm99, %v211
  %v219 = vmul.f32 %v182, 0.9
  %v220 = vadd.f32 %v219, %v58
  %v221 = vsub.f32 %v220, %v185
  %vm222 = vcmp.gt.f32.partialorder %v221, 1.0
  %v223 = vsel %vm222, 1, 0
  %v224 = vcvt.s32.f32 %v223
  %v226 = vsel %vm36, %v224, 0
  %228 = vmatpush.msra.mxu0 0.0
  %229 = vmatpush.msra.mxu0 0.0
  %230 = vmatpush.msra.mxu0 0.0
  %231 = vmatpush.msra.mxu0 0.0
  %232 = vmatpush.msra.mxu0 0.0
  %233 = vmatpush.msra.mxu0 0.0
  %234 = vmatpush.msra.mxu0 0.0
  %235 = vmatpush.msra.mxu0 0.0
  %236 = vmatpush.msra.mxu0 0.0
  %237 = vmatpush.msra.mxu0 0.0
  %238 = vmatpush.msra.mxu0 0.0
  %239 = vmatpush.msra.mxu0 0.0
  %240 = vmatpush.msra.mxu0 %v26
  %241 = vmatpush.msra.mxu0 %v25
  %242 = vmatpush.msra.mxu0 %v24
  %243 = vmatpush.msra.mxu0 %v23
  %244 = vmatmul.f32.gmra.mxu0 %v226
  %v245 = vpop.f32.mrf.mxu0
  %v246 = vadd.f32 %v69, %v245
  %247 = vdwg.mxu0
  %v248 = vmul.f32 %v211, 0.9
  %v249 = vadd.f32 %v248, %v246
  %v250 = vsub.f32 %v249, %v214
  %vm251 = vcmp.gt.f32.partialorder %v250, 1.0
  %v252 = vsel %vm251, 1, 0
  %v253 = vcvt.s32.f32 %v252
  %s254 = scalar_lea.vmem %s5, 32
  %255 = vst.msk [vmem:[%s254] sm:$0xff] %vm99, %v253
  %s256 = scalar_lea.vmem %s6, 32
  %257 = vst.msk [vmem:[%s256] sm:$0xff] %vm99, %v250
  %v258 = vmul.f32 %v221, 0.9
  %v259 = vadd.f32 %v258, %v58
  %v260 = vsub.f32 %v259, %v224
  %vm261 = vcmp.gt.f32.partialorder %v260, 1.0
  %v262 = vsel %vm261, 1, 0
  %v263 = vcvt.s32.f32 %v262
  %v265 = vsel %vm36, %v263, 0
  %267 = vmatpush.msra.mxu0 0.0
  %268 = vmatpush.msra.mxu0 0.0
  %269 = vmatpush.msra.mxu0 0.0
  %270 = vmatpush.msra.mxu0 0.0
  %271 = vmatpush.msra.mxu0 0.0
  %272 = vmatpush.msra.mxu0 0.0
  %273 = vmatpush.msra.mxu0 0.0
  %274 = vmatpush.msra.mxu0 0.0
  %275 = vmatpush.msra.mxu0 0.0
  %276 = vmatpush.msra.mxu0 0.0
  %277 = vmatpush.msra.mxu0 0.0
  %278 = vmatpush.msra.mxu0 0.0
  %279 = vmatpush.msra.mxu0 %v26
  %280 = vmatpush.msra.mxu0 %v25
  %281 = vmatpush.msra.mxu0 %v24
  %282 = vmatpush.msra.mxu0 %v23
  %283 = vmatmul.f32.gmra.mxu0 %v265
  %v284 = vpop.f32.mrf.mxu0
  %v285 = vadd.f32 %v69, %v284
  %286 = vdwg.mxu0
  %v287 = vmul.f32 %v250, 0.9
  %v288 = vadd.f32 %v287, %v285
  %v289 = vsub.f32 %v288, %v253
  %vm290 = vcmp.gt.f32.partialorder %v289, 1.0
  %v291 = vsel %vm290, 1, 0
  %v292 = vcvt.s32.f32 %v291
  %s293 = scalar_lea.vmem %s5, 40
  %294 = vst.msk [vmem:[%s293] sm:$0xff] %vm99, %v292
  %s295 = scalar_lea.vmem %s6, 40
  %296 = vst.msk [vmem:[%s295] sm:$0xff] %vm99, %v289
  %v297 = vmul.f32 %v260, 0.9
  %v298 = vadd.f32 %v297, %v58
  %v299 = vsub.f32 %v298, %v263
  %vm300 = vcmp.gt.f32.partialorder %v299, 1.0
  %v301 = vsel %vm300, 1, 0
  %v302 = vcvt.s32.f32 %v301
  %v304 = vsel %vm36, %v302, 0
  %306 = vmatpush.msra.mxu0 0.0
  %307 = vmatpush.msra.mxu0 0.0
  %308 = vmatpush.msra.mxu0 0.0
  %309 = vmatpush.msra.mxu0 0.0
  %310 = vmatpush.msra.mxu0 0.0
  %311 = vmatpush.msra.mxu0 0.0
  %312 = vmatpush.msra.mxu0 0.0
  %313 = vmatpush.msra.mxu0 0.0
  %314 = vmatpush.msra.mxu0 0.0
  %315 = vmatpush.msra.mxu0 0.0
  %316 = vmatpush.msra.mxu0 0.0
  %317 = vmatpush.msra.mxu0 0.0
  %318 = vmatpush.msra.mxu0 %v26
  %319 = vmatpush.msra.mxu0 %v25
  %320 = vmatpush.msra.mxu0 %v24
  %321 = vmatpush.msra.mxu0 %v23
  %322 = vmatmul.f32.gmra.mxu0 %v304
  %v323 = vpop.f32.mrf.mxu0
  %v324 = vadd.f32 %v69, %v323
  %325 = vdwg.mxu0
  %v326 = vmul.f32 %v289, 0.9
  %v327 = vadd.f32 %v326, %v324
  %v328 = vsub.f32 %v327, %v292
  %vm329 = vcmp.gt.f32.partialorder %v328, 1.0
  %v330 = vsel %vm329, 1, 0
  %v331 = vcvt.s32.f32 %v330
  %s332 = scalar_lea.vmem %s5, 48
  %333 = vst.msk [vmem:[%s332] sm:$0xff] %vm99, %v331
  %s334 = scalar_lea.vmem %s6, 48
  %335 = vst.msk [vmem:[%s334] sm:$0xff] %vm99, %v328
  %v336 = vmul.f32 %v299, 0.9
  %v337 = vadd.f32 %v336, %v58
  %v338 = vsub.f32 %v337, %v302
  %vm339 = vcmp.gt.f32.partialorder %v338, 1.0
  %v340 = vsel %vm339, 1, 0
  %v341 = vcvt.s32.f32 %v340
  %v343 = vsel %vm36, %v341, 0
  %345 = vmatpush.msra.mxu0 0.0
  %346 = vmatpush.msra.mxu0 0.0
  %347 = vmatpush.msra.mxu0 0.0
  %348 = vmatpush.msra.mxu0 0.0
  %349 = vmatpush.msra.mxu0 0.0
  %350 = vmatpush.msra.mxu0 0.0
  %351 = vmatpush.msra.mxu0 0.0
  %352 = vmatpush.msra.mxu0 0.0
  %353 = vmatpush.msra.mxu0 0.0
  %354 = vmatpush.msra.mxu0 0.0
  %355 = vmatpush.msra.mxu0 0.0
  %356 = vmatpush.msra.mxu0 0.0
  %357 = vmatpush.msra.mxu0 %v26
  %358 = vmatpush.msra.mxu0 %v25
  %359 = vmatpush.msra.mxu0 %v24
  %360 = vmatpush.msra.mxu0 %v23
  %361 = vmatmul.f32.gmra.mxu0 %v343
  %v362 = vpop.f32.mrf.mxu0
  %v363 = vadd.f32 %v69, %v362
  %364 = vdwg.mxu0
  %v365 = vmul.f32 %v328, 0.9
  %v366 = vadd.f32 %v365, %v363
  %v367 = vsub.f32 %v366, %v331
  %vm368 = vcmp.gt.f32.partialorder %v367, 1.0
  %v369 = vsel %vm368, 1, 0
  %v370 = vcvt.s32.f32 %v369
  %s371 = scalar_lea.vmem %s5, 56
  %372 = vst.msk [vmem:[%s371] sm:$0xff] %vm99, %v370
  %s373 = scalar_lea.vmem %s6, 56
  %374 = vst.msk [vmem:[%s373] sm:$0xff] %vm99, %v367
  %v375 = vmul.f32 %v338, 0.9
  %v376 = vadd.f32 %v375, %v58
  %v377 = vsub.f32 %v376, %v341
  %vm378 = vcmp.gt.f32.partialorder %v377, 1.0
  %v379 = vsel %vm378, 1, 0
  %v380 = vcvt.s32.f32 %v379
  %v382 = vsel %vm36, %v380, 0
  %384 = vmatpush.msra.mxu0 0.0
  %385 = vmatpush.msra.mxu0 0.0
  %386 = vmatpush.msra.mxu0 0.0
  %387 = vmatpush.msra.mxu0 0.0
  %388 = vmatpush.msra.mxu0 0.0
  %389 = vmatpush.msra.mxu0 0.0
  %390 = vmatpush.msra.mxu0 0.0
  %391 = vmatpush.msra.mxu0 0.0
  %392 = vmatpush.msra.mxu0 0.0
  %393 = vmatpush.msra.mxu0 0.0
  %394 = vmatpush.msra.mxu0 0.0
  %395 = vmatpush.msra.mxu0 0.0
  %396 = vmatpush.msra.mxu0 %v26
  %397 = vmatpush.msra.mxu0 %v25
  %398 = vmatpush.msra.mxu0 %v24
  %399 = vmatpush.msra.mxu0 %v23
  %400 = vmatmul.f32.gmra.mxu0 %v382
  %v401 = vpop.f32.mrf.mxu0
  %v402 = vadd.f32 %v69, %v401
  %403 = vdwg.mxu0
  %v404 = vmul.f32 %v367, 0.9
  %v405 = vadd.f32 %v404, %v402
  %v406 = vsub.f32 %v405, %v370
  %vm407 = vcmp.gt.f32.partialorder %v406, 1.0
  %v408 = vsel %vm407, 1, 0
  %v409 = vcvt.s32.f32 %v408
  %s410 = scalar_lea.vmem %s5, 64
  %411 = vst.msk [vmem:[%s410] sm:$0xff] %vm99, %v409
  %s412 = scalar_lea.vmem %s6, 64
  %413 = vst.msk [vmem:[%s412] sm:$0xff] %vm99, %v406
  %v414 = vmul.f32 %v377, 0.9
  %v415 = vadd.f32 %v414, %v58
  %v416 = vsub.f32 %v415, %v380
  %vm417 = vcmp.gt.f32.partialorder %v416, 1.0
  %v418 = vsel %vm417, 1, 0
  %v419 = vcvt.s32.f32 %v418
  %v421 = vsel %vm36, %v419, 0
  %423 = vmatpush.msra.mxu0 0.0
  %424 = vmatpush.msra.mxu0 0.0
  %425 = vmatpush.msra.mxu0 0.0
  %426 = vmatpush.msra.mxu0 0.0
  %427 = vmatpush.msra.mxu0 0.0
  %428 = vmatpush.msra.mxu0 0.0
  %429 = vmatpush.msra.mxu0 0.0
  %430 = vmatpush.msra.mxu0 0.0
  %431 = vmatpush.msra.mxu0 0.0
  %432 = vmatpush.msra.mxu0 0.0
  %433 = vmatpush.msra.mxu0 0.0
  %434 = vmatpush.msra.mxu0 0.0
  %435 = vmatpush.msra.mxu0 %v26
  %436 = vmatpush.msra.mxu0 %v25
  %437 = vmatpush.msra.mxu0 %v24
  %438 = vmatpush.msra.mxu0 %v23
  %439 = vmatmul.f32.gmra.mxu0 %v421
  %v440 = vpop.f32.mrf.mxu0
  %v441 = vadd.f32 %v69, %v440
  %442 = vdwg.mxu0
  %v443 = vmul.f32 %v406, 0.9
  %v444 = vadd.f32 %v443, %v441
  %v445 = vsub.f32 %v444, %v409
  %vm446 = vcmp.gt.f32.partialorder %v445, 1.0
  %v447 = vsel %vm446, 1, 0
  %v448 = vcvt.s32.f32 %v447
  %s449 = scalar_lea.vmem %s5, 72
  %450 = vst.msk [vmem:[%s449] sm:$0xff] %vm99, %v448
  %s451 = scalar_lea.vmem %s6, 72
  %452 = vst.msk [vmem:[%s451] sm:$0xff] %vm99, %v445
  %v453 = vmul.f32 %v416, 0.9
  %v454 = vadd.f32 %v453, %v58
  %v455 = vsub.f32 %v454, %v419
  %vm456 = vcmp.gt.f32.partialorder %v455, 1.0
  %v457 = vsel %vm456, 1, 0
  %v458 = vcvt.s32.f32 %v457
  %v460 = vsel %vm36, %v458, 0
  %462 = vmatpush.msra.mxu0 0.0
  %463 = vmatpush.msra.mxu0 0.0
  %464 = vmatpush.msra.mxu0 0.0
  %465 = vmatpush.msra.mxu0 0.0
  %466 = vmatpush.msra.mxu0 0.0
  %467 = vmatpush.msra.mxu0 0.0
  %468 = vmatpush.msra.mxu0 0.0
  %469 = vmatpush.msra.mxu0 0.0
  %470 = vmatpush.msra.mxu0 0.0
  %471 = vmatpush.msra.mxu0 0.0
  %472 = vmatpush.msra.mxu0 0.0
  %473 = vmatpush.msra.mxu0 0.0
  %474 = vmatpush.msra.mxu0 %v26
  %475 = vmatpush.msra.mxu0 %v25
  %476 = vmatpush.msra.mxu0 %v24
  %477 = vmatpush.msra.mxu0 %v23
  %478 = vmatmul.f32.gmra.mxu0 %v460
  %v479 = vpop.f32.mrf.mxu0
  %v480 = vadd.f32 %v69, %v479
  %481 = vdwg.mxu0
  %v482 = vmul.f32 %v445, 0.9
  %v483 = vadd.f32 %v482, %v480
  %v484 = vsub.f32 %v483, %v448
  %vm485 = vcmp.gt.f32.partialorder %v484, 1.0
  %v486 = vsel %vm485, 1, 0
  %v487 = vcvt.s32.f32 %v486
  %s488 = scalar_lea.vmem %s5, 80
  %489 = vst.msk [vmem:[%s488] sm:$0xff] %vm99, %v487
  %s490 = scalar_lea.vmem %s6, 80
  %491 = vst.msk [vmem:[%s490] sm:$0xff] %vm99, %v484
  %v492 = vmul.f32 %v455, 0.9
  %v493 = vadd.f32 %v492, %v58
  %v494 = vsub.f32 %v493, %v458
  %vm495 = vcmp.gt.f32.partialorder %v494, 1.0
  %v496 = vsel %vm495, 1, 0
  %v497 = vcvt.s32.f32 %v496
  %v499 = vsel %vm36, %v497, 0
  %501 = vmatpush.msra.mxu0 0.0
  %502 = vmatpush.msra.mxu0 0.0
  %503 = vmatpush.msra.mxu0 0.0
  %504 = vmatpush.msra.mxu0 0.0
  %505 = vmatpush.msra.mxu0 0.0
  %506 = vmatpush.msra.mxu0 0.0
  %507 = vmatpush.msra.mxu0 0.0
  %508 = vmatpush.msra.mxu0 0.0
  %509 = vmatpush.msra.mxu0 0.0
  %510 = vmatpush.msra.mxu0 0.0
  %511 = vmatpush.msra.mxu0 0.0
  %512 = vmatpush.msra.mxu0 0.0
  %513 = vmatpush.msra.mxu0 %v26
  %514 = vmatpush.msra.mxu0 %v25
  %515 = vmatpush.msra.mxu0 %v24
  %516 = vmatpush.msra.mxu0 %v23
  %517 = vmatmul.f32.gmra.mxu0 %v499
  %v518 = vpop.f32.mrf.mxu0
  %v519 = vadd.f32 %v69, %v518
  %520 = vdwg.mxu0
  %v521 = vmul.f32 %v484, 0.9
  %v522 = vadd.f32 %v521, %v519
  %v523 = vsub.f32 %v522, %v487
  %vm524 = vcmp.gt.f32.partialorder %v523, 1.0
  %v525 = vsel %vm524, 1, 0
  %v526 = vcvt.s32.f32 %v525
  %s527 = scalar_lea.vmem %s5, 88
  %528 = vst.msk [vmem:[%s527] sm:$0xff] %vm99, %v526
  %s529 = scalar_lea.vmem %s6, 88
  %530 = vst.msk [vmem:[%s529] sm:$0xff] %vm99, %v523
  %v531 = vmul.f32 %v494, 0.9
  %v532 = vadd.f32 %v531, %v58
  %v533 = vsub.f32 %v532, %v497
  %vm534 = vcmp.gt.f32.partialorder %v533, 1.0
  %v535 = vsel %vm534, 1, 0
  %v536 = vcvt.s32.f32 %v535
  %v538 = vsel %vm36, %v536, 0
  %540 = vmatpush.msra.mxu0 0.0
  %541 = vmatpush.msra.mxu0 0.0
  %542 = vmatpush.msra.mxu0 0.0
  %543 = vmatpush.msra.mxu0 0.0
  %544 = vmatpush.msra.mxu0 0.0
  %545 = vmatpush.msra.mxu0 0.0
  %546 = vmatpush.msra.mxu0 0.0
  %547 = vmatpush.msra.mxu0 0.0
  %548 = vmatpush.msra.mxu0 0.0
  %549 = vmatpush.msra.mxu0 0.0
  %550 = vmatpush.msra.mxu0 0.0
  %551 = vmatpush.msra.mxu0 0.0
  %552 = vmatpush.msra.mxu0 %v26
  %553 = vmatpush.msra.mxu0 %v25
  %554 = vmatpush.msra.mxu0 %v24
  %555 = vmatpush.msra.mxu0 %v23
  %556 = vmatmul.f32.gmra.mxu0 %v538
  %v557 = vpop.f32.mrf.mxu0
  %v558 = vadd.f32 %v69, %v557
  %559 = vdwg.mxu0
  %v560 = vmul.f32 %v523, 0.9
  %v561 = vadd.f32 %v560, %v558
  %v562 = vsub.f32 %v561, %v526
  %vm563 = vcmp.gt.f32.partialorder %v562, 1.0
  %v564 = vsel %vm563, 1, 0
  %v565 = vcvt.s32.f32 %v564
  %s566 = scalar_lea.vmem %s5, 96
  %567 = vst.msk [vmem:[%s566] sm:$0xff] %vm99, %v565
  %s568 = scalar_lea.vmem %s6, 96
  %569 = vst.msk [vmem:[%s568] sm:$0xff] %vm99, %v562
  %v570 = vmul.f32 %v533, 0.9
  %v571 = vadd.f32 %v570, %v58
  %v572 = vsub.f32 %v571, %v536
  %vm573 = vcmp.gt.f32.partialorder %v572, 1.0
  %v574 = vsel %vm573, 1, 0
  %v575 = vcvt.s32.f32 %v574
  %v577 = vsel %vm36, %v575, 0
  %579 = vmatpush.msra.mxu0 0.0
  %580 = vmatpush.msra.mxu0 0.0
  %581 = vmatpush.msra.mxu0 0.0
  %582 = vmatpush.msra.mxu0 0.0
  %583 = vmatpush.msra.mxu0 0.0
  %584 = vmatpush.msra.mxu0 0.0
  %585 = vmatpush.msra.mxu0 0.0
  %586 = vmatpush.msra.mxu0 0.0
  %587 = vmatpush.msra.mxu0 0.0
  %588 = vmatpush.msra.mxu0 0.0
  %589 = vmatpush.msra.mxu0 0.0
  %590 = vmatpush.msra.mxu0 0.0
  %591 = vmatpush.msra.mxu0 %v26
  %592 = vmatpush.msra.mxu0 %v25
  %593 = vmatpush.msra.mxu0 %v24
  %594 = vmatpush.msra.mxu0 %v23
  %595 = vmatmul.f32.gmra.mxu0 %v577
  %v596 = vpop.f32.mrf.mxu0
  %v597 = vadd.f32 %v69, %v596
  %598 = vdwg.mxu0
  %v599 = vmul.f32 %v562, 0.9
  %v600 = vadd.f32 %v599, %v597
  %v601 = vsub.f32 %v600, %v565
  %vm602 = vcmp.gt.f32.partialorder %v601, 1.0
  %v603 = vsel %vm602, 1, 0
  %v604 = vcvt.s32.f32 %v603
  %s605 = scalar_lea.vmem %s5, 104
  %606 = vst.msk [vmem:[%s605] sm:$0xff] %vm99, %v604
  %s607 = scalar_lea.vmem %s6, 104
  %608 = vst.msk [vmem:[%s607] sm:$0xff] %vm99, %v601
  %v609 = vmul.f32 %v572, 0.9
  %v610 = vadd.f32 %v609, %v58
  %v611 = vsub.f32 %v610, %v575
  %vm612 = vcmp.gt.f32.partialorder %v611, 1.0
  %v613 = vsel %vm612, 1, 0
  %v614 = vcvt.s32.f32 %v613
  %v616 = vsel %vm36, %v614, 0
  %618 = vmatpush.msra.mxu0 0.0
  %619 = vmatpush.msra.mxu0 0.0
  %620 = vmatpush.msra.mxu0 0.0
  %621 = vmatpush.msra.mxu0 0.0
  %622 = vmatpush.msra.mxu0 0.0
  %623 = vmatpush.msra.mxu0 0.0
  %624 = vmatpush.msra.mxu0 0.0
  %625 = vmatpush.msra.mxu0 0.0
  %626 = vmatpush.msra.mxu0 0.0
  %627 = vmatpush.msra.mxu0 0.0
  %628 = vmatpush.msra.mxu0 0.0
  %629 = vmatpush.msra.mxu0 0.0
  %630 = vmatpush.msra.mxu0 %v26
  %631 = vmatpush.msra.mxu0 %v25
  %632 = vmatpush.msra.mxu0 %v24
  %633 = vmatpush.msra.mxu0 %v23
  %634 = vmatmul.f32.gmra.mxu0 %v616
  %v635 = vpop.f32.mrf.mxu0
  %v636 = vadd.f32 %v69, %v635
  %637 = vdwg.mxu0
  %v638 = vmul.f32 %v601, 0.9
  %v639 = vadd.f32 %v638, %v636
  %v640 = vsub.f32 %v639, %v604
  %vm641 = vcmp.gt.f32.partialorder %v640, 1.0
  %v642 = vsel %vm641, 1, 0
  %v643 = vcvt.s32.f32 %v642
  %s644 = scalar_lea.vmem %s5, 112
  %645 = vst.msk [vmem:[%s644] sm:$0xff] %vm99, %v643
  %s646 = scalar_lea.vmem %s6, 112
  %647 = vst.msk [vmem:[%s646] sm:$0xff] %vm99, %v640
  %v648 = vmul.f32 %v611, 0.9
  %v649 = vadd.f32 %v648, %v58
  %v650 = vsub.f32 %v649, %v614
  %vm651 = vcmp.gt.f32.partialorder %v650, 1.0
  %v652 = vsel %vm651, 1, 0
  %v653 = vcvt.s32.f32 %v652
  %v655 = vsel %vm36, %v653, 0
  %657 = vmatpush.msra.mxu0 0.0
  %658 = vmatpush.msra.mxu0 0.0
  %659 = vmatpush.msra.mxu0 0.0
  %660 = vmatpush.msra.mxu0 0.0
  %661 = vmatpush.msra.mxu0 0.0
  %662 = vmatpush.msra.mxu0 0.0
  %663 = vmatpush.msra.mxu0 0.0
  %664 = vmatpush.msra.mxu0 0.0
  %665 = vmatpush.msra.mxu0 0.0
  %666 = vmatpush.msra.mxu0 0.0
  %667 = vmatpush.msra.mxu0 0.0
  %668 = vmatpush.msra.mxu0 0.0
  %669 = vmatpush.msra.mxu0 %v26
  %670 = vmatpush.msra.mxu0 %v25
  %671 = vmatpush.msra.mxu0 %v24
  %672 = vmatpush.msra.mxu0 %v23
  %673 = vmatmul.f32.gmra.mxu0 %v655
  %v674 = vpop.f32.mrf.mxu0
  %v675 = vadd.f32 %v69, %v674
  %676 = vdwg.mxu0
  %v677 = vmul.f32 %v640, 0.9
  %v678 = vadd.f32 %v677, %v675
  %v679 = vsub.f32 %v678, %v643
  %vm680 = vcmp.gt.f32.partialorder %v679, 1.0
  %v681 = vsel %vm680, 1, 0
  %v682 = vcvt.s32.f32 %v681
  %s683 = scalar_lea.vmem %s5, 120
  %684 = vst.msk [vmem:[%s683] sm:$0xff] %vm99, %v682
  %s685 = scalar_lea.vmem %s6, 120
  %686 = vst.msk [vmem:[%s685] sm:$0xff] %vm99, %v679
  %v687 = vmul.f32 %v650, 0.9
  %v688 = vadd.f32 %v687, %v58
  %v689 = vsub.f32 %v688, %v653
  %vm690 = vcmp.gt.f32.partialorder %v689, 1.0
  %v691 = vsel %vm690, 1, 0
  %v692 = vcvt.s32.f32 %v691
  %v694 = vsel %vm36, %v692, 0
  %696 = vmatpush.msra.mxu0 0.0
  %697 = vmatpush.msra.mxu0 0.0
  %698 = vmatpush.msra.mxu0 0.0
  %699 = vmatpush.msra.mxu0 0.0
  %700 = vmatpush.msra.mxu0 0.0
  %701 = vmatpush.msra.mxu0 0.0
  %702 = vmatpush.msra.mxu0 0.0
  %703 = vmatpush.msra.mxu0 0.0
  %704 = vmatpush.msra.mxu0 0.0
  %705 = vmatpush.msra.mxu0 0.0
  %706 = vmatpush.msra.mxu0 0.0
  %707 = vmatpush.msra.mxu0 0.0
  %708 = vmatpush.msra.mxu0 %v26
  %709 = vmatpush.msra.mxu0 %v25
  %710 = vmatpush.msra.mxu0 %v24
  %711 = vmatpush.msra.mxu0 %v23
  %712 = vmatmul.f32.gmra.mxu0 %v694
  %v713 = vpop.f32.mrf.mxu0
  %v714 = vadd.f32 %v69, %v713
  %715 = vdwg.mxu0
  %v716 = vmul.f32 %v679, 0.9
  %v717 = vadd.f32 %v716, %v714
  %v718 = vsub.f32 %v717, %v682
  %vm719 = vcmp.gt.f32.partialorder %v718, 1.0
  %v720 = vsel %vm719, 1, 0
  %v721 = vcvt.s32.f32 %v720
  %s722 = scalar_lea.vmem %s5, 128
  %723 = vst.msk [vmem:[%s722] sm:$0xff] %vm99, %v721
  %s724 = scalar_lea.vmem %s6, 128
  %725 = vst.msk [vmem:[%s724] sm:$0xff] %vm99, %v718
  %v726 = vmul.f32 %v689, 0.9
  %v727 = vadd.f32 %v726, %v58
  %v728 = vsub.f32 %v727, %v692
  %vm729 = vcmp.gt.f32.partialorder %v728, 1.0
  %v730 = vsel %vm729, 1, 0
  %v731 = vcvt.s32.f32 %v730
  %v733 = vsel %vm36, %v731, 0
  %735 = vmatpush.msra.mxu0 0.0
  %736 = vmatpush.msra.mxu0 0.0
  %737 = vmatpush.msra.mxu0 0.0
  %738 = vmatpush.msra.mxu0 0.0
  %739 = vmatpush.msra.mxu0 0.0
  %740 = vmatpush.msra.mxu0 0.0
  %741 = vmatpush.msra.mxu0 0.0
  %742 = vmatpush.msra.mxu0 0.0
  %743 = vmatpush.msra.mxu0 0.0
  %744 = vmatpush.msra.mxu0 0.0
  %745 = vmatpush.msra.mxu0 0.0
  %746 = vmatpush.msra.mxu0 0.0
  %747 = vmatpush.msra.mxu0 %v26
  %748 = vmatpush.msra.mxu0 %v25
  %749 = vmatpush.msra.mxu0 %v24
  %750 = vmatpush.msra.mxu0 %v23
  %751 = vmatmul.f32.gmra.mxu0 %v733
  %v752 = vpop.f32.mrf.mxu0
  %v753 = vadd.f32 %v69, %v752
  %754 = vdwg.mxu0
  %v755 = vmul.f32 %v718, 0.9
  %v756 = vadd.f32 %v755, %v753
  %v757 = vsub.f32 %v756, %v721
  %vm758 = vcmp.gt.f32.partialorder %v757, 1.0
  %v759 = vsel %vm758, 1, 0
  %v760 = vcvt.s32.f32 %v759
  %s761 = scalar_lea.vmem %s5, 136
  %762 = vst.msk [vmem:[%s761] sm:$0xff] %vm99, %v760
  %s763 = scalar_lea.vmem %s6, 136
  %764 = vst.msk [vmem:[%s763] sm:$0xff] %vm99, %v757
  %v765 = vmul.f32 %v728, 0.9
  %v766 = vadd.f32 %v765, %v58
  %v767 = vsub.f32 %v766, %v731
  %vm768 = vcmp.gt.f32.partialorder %v767, 1.0
  %v769 = vsel %vm768, 1, 0
  %v770 = vcvt.s32.f32 %v769
  %v772 = vsel %vm36, %v770, 0
  %774 = vmatpush.msra.mxu0 0.0
  %775 = vmatpush.msra.mxu0 0.0
  %776 = vmatpush.msra.mxu0 0.0
  %777 = vmatpush.msra.mxu0 0.0
  %778 = vmatpush.msra.mxu0 0.0
  %779 = vmatpush.msra.mxu0 0.0
  %780 = vmatpush.msra.mxu0 0.0
  %781 = vmatpush.msra.mxu0 0.0
  %782 = vmatpush.msra.mxu0 0.0
  %783 = vmatpush.msra.mxu0 0.0
  %784 = vmatpush.msra.mxu0 0.0
  %785 = vmatpush.msra.mxu0 0.0
  %786 = vmatpush.msra.mxu0 %v26
  %787 = vmatpush.msra.mxu0 %v25
  %788 = vmatpush.msra.mxu0 %v24
  %789 = vmatpush.msra.mxu0 %v23
  %790 = vmatmul.f32.gmra.mxu0 %v772
  %v791 = vpop.f32.mrf.mxu0
  %v792 = vadd.f32 %v69, %v791
  %793 = vdwg.mxu0
  %v794 = vmul.f32 %v757, 0.9
  %v795 = vadd.f32 %v794, %v792
  %v796 = vsub.f32 %v795, %v760
  %vm797 = vcmp.gt.f32.partialorder %v796, 1.0
  %v798 = vsel %vm797, 1, 0
  %v799 = vcvt.s32.f32 %v798
  %s800 = scalar_lea.vmem %s5, 144
  %801 = vst.msk [vmem:[%s800] sm:$0xff] %vm99, %v799
  %s802 = scalar_lea.vmem %s6, 144
  %803 = vst.msk [vmem:[%s802] sm:$0xff] %vm99, %v796
  %v804 = vmul.f32 %v767, 0.9
  %v805 = vadd.f32 %v804, %v58
  %v806 = vsub.f32 %v805, %v770
  %vm807 = vcmp.gt.f32.partialorder %v806, 1.0
  %v808 = vsel %vm807, 1, 0
  %v809 = vcvt.s32.f32 %v808
  %v811 = vsel %vm36, %v809, 0
  %813 = vmatpush.msra.mxu0 0.0
  %814 = vmatpush.msra.mxu0 0.0
  %815 = vmatpush.msra.mxu0 0.0
  %816 = vmatpush.msra.mxu0 0.0
  %817 = vmatpush.msra.mxu0 0.0
  %818 = vmatpush.msra.mxu0 0.0
  %819 = vmatpush.msra.mxu0 0.0
  %820 = vmatpush.msra.mxu0 0.0
  %821 = vmatpush.msra.mxu0 0.0
  %822 = vmatpush.msra.mxu0 0.0
  %823 = vmatpush.msra.mxu0 0.0
  %824 = vmatpush.msra.mxu0 0.0
  %825 = vmatpush.msra.mxu0 %v26
  %826 = vmatpush.msra.mxu0 %v25
  %827 = vmatpush.msra.mxu0 %v24
  %828 = vmatpush.msra.mxu0 %v23
  %829 = vmatmul.f32.gmra.mxu0 %v811
  %v830 = vpop.f32.mrf.mxu0
  %v831 = vadd.f32 %v69, %v830
  %832 = vdwg.mxu0
  %v833 = vmul.f32 %v796, 0.9
  %v834 = vadd.f32 %v833, %v831
  %v835 = vsub.f32 %v834, %v799
  %vm836 = vcmp.gt.f32.partialorder %v835, 1.0
  %v837 = vsel %vm836, 1, 0
  %v838 = vcvt.s32.f32 %v837
  %s839 = scalar_lea.vmem %s5, 152
  %840 = vst.msk [vmem:[%s839] sm:$0xff] %vm99, %v838
  %s841 = scalar_lea.vmem %s6, 152
  %842 = vst.msk [vmem:[%s841] sm:$0xff] %vm99, %v835
  %v843 = vmul.f32 %v806, 0.9
  %v844 = vadd.f32 %v843, %v58
  %v845 = vsub.f32 %v844, %v809
  %vm846 = vcmp.gt.f32.partialorder %v845, 1.0
  %v847 = vsel %vm846, 1, 0
  %v848 = vcvt.s32.f32 %v847
  %v850 = vsel %vm36, %v848, 0
  %852 = vmatpush.msra.mxu0 0.0
  %853 = vmatpush.msra.mxu0 0.0
  %854 = vmatpush.msra.mxu0 0.0
  %855 = vmatpush.msra.mxu0 0.0
  %856 = vmatpush.msra.mxu0 0.0
  %857 = vmatpush.msra.mxu0 0.0
  %858 = vmatpush.msra.mxu0 0.0
  %859 = vmatpush.msra.mxu0 0.0
  %860 = vmatpush.msra.mxu0 0.0
  %861 = vmatpush.msra.mxu0 0.0
  %862 = vmatpush.msra.mxu0 0.0
  %863 = vmatpush.msra.mxu0 0.0
  %864 = vmatpush.msra.mxu0 %v26
  %865 = vmatpush.msra.mxu0 %v25
  %866 = vmatpush.msra.mxu0 %v24
  %867 = vmatpush.msra.mxu0 %v23
  %868 = vmatmul.f32.gmra.mxu0 %v850
  %v869 = vpop.f32.mrf.mxu0
  %v870 = vadd.f32 %v69, %v869
  %871 = vdwg.mxu0
  %v872 = vmul.f32 %v835, 0.9
  %v873 = vadd.f32 %v872, %v870
  %v874 = vsub.f32 %v873, %v838
  %vm875 = vcmp.gt.f32.partialorder %v874, 1.0
  %v876 = vsel %vm875, 1, 0
  %v877 = vcvt.s32.f32 %v876
  %s878 = scalar_lea.vmem %s5, 160
  %879 = vst.msk [vmem:[%s878] sm:$0xff] %vm99, %v877
  %s880 = scalar_lea.vmem %s6, 160
  %881 = vst.msk [vmem:[%s880] sm:$0xff] %vm99, %v874
  %v882 = vmul.f32 %v845, 0.9
  %v883 = vadd.f32 %v882, %v58
  %v884 = vsub.f32 %v883, %v848
  %vm885 = vcmp.gt.f32.partialorder %v884, 1.0
  %v886 = vsel %vm885, 1, 0
  %v887 = vcvt.s32.f32 %v886
  %v889 = vsel %vm36, %v887, 0
  %891 = vmatpush.msra.mxu0 0.0
  %892 = vmatpush.msra.mxu0 0.0
  %893 = vmatpush.msra.mxu0 0.0
  %894 = vmatpush.msra.mxu0 0.0
  %895 = vmatpush.msra.mxu0 0.0
  %896 = vmatpush.msra.mxu0 0.0
  %897 = vmatpush.msra.mxu0 0.0
  %898 = vmatpush.msra.mxu0 0.0
  %899 = vmatpush.msra.mxu0 0.0
  %900 = vmatpush.msra.mxu0 0.0
  %901 = vmatpush.msra.mxu0 0.0
  %902 = vmatpush.msra.mxu0 0.0
  %903 = vmatpush.msra.mxu0 %v26
  %904 = vmatpush.msra.mxu0 %v25
  %905 = vmatpush.msra.mxu0 %v24
  %906 = vmatpush.msra.mxu0 %v23
  %907 = vmatmul.f32.gmra.mxu0 %v889
  %v908 = vpop.f32.mrf.mxu0
  %v909 = vadd.f32 %v69, %v908
  %910 = vdwg.mxu0
  %v911 = vmul.f32 %v874, 0.9
  %v912 = vadd.f32 %v911, %v909
  %v913 = vsub.f32 %v912, %v877
  %vm914 = vcmp.gt.f32.partialorder %v913, 1.0
  %v915 = vsel %vm914, 1, 0
  %v916 = vcvt.s32.f32 %v915
  %s917 = scalar_lea.vmem %s5, 168
  %918 = vst.msk [vmem:[%s917] sm:$0xff] %vm99, %v916
  %s919 = scalar_lea.vmem %s6, 168
  %920 = vst.msk [vmem:[%s919] sm:$0xff] %vm99, %v913
  %v921 = vmul.f32 %v884, 0.9
  %v922 = vadd.f32 %v921, %v58
  %v923 = vsub.f32 %v922, %v887
  %vm924 = vcmp.gt.f32.partialorder %v923, 1.0
  %v925 = vsel %vm924, 1, 0
  %v926 = vcvt.s32.f32 %v925
  %v928 = vsel %vm36, %v926, 0
  %930 = vmatpush.msra.mxu0 0.0
  %931 = vmatpush.msra.mxu0 0.0
  %932 = vmatpush.msra.mxu0 0.0
  %933 = vmatpush.msra.mxu0 0.0
  %934 = vmatpush.msra.mxu0 0.0
  %935 = vmatpush.msra.mxu0 0.0
  %936 = vmatpush.msra.mxu0 0.0
  %937 = vmatpush.msra.mxu0 0.0
  %938 = vmatpush.msra.mxu0 0.0
  %939 = vmatpush.msra.mxu0 0.0
  %940 = vmatpush.msra.mxu0 0.0
  %941 = vmatpush.msra.mxu0 0.0
  %942 = vmatpush.msra.mxu0 %v26
  %943 = vmatpush.msra.mxu0 %v25
  %944 = vmatpush.msra.mxu0 %v24
  %945 = vmatpush.msra.mxu0 %v23
  %946 = vmatmul.f32.gmra.mxu0 %v928
  %v947 = vpop.f32.mrf.mxu0
  %v948 = vadd.f32 %v69, %v947
  %949 = vdwg.mxu0
  %v950 = vmul.f32 %v913, 0.9
  %v951 = vadd.f32 %v950, %v948
  %v952 = vsub.f32 %v951, %v916
  %vm953 = vcmp.gt.f32.partialorder %v952, 1.0
  %v954 = vsel %vm953, 1, 0
  %v955 = vcvt.s32.f32 %v954
  %s956 = scalar_lea.vmem %s5, 176
  %957 = vst.msk [vmem:[%s956] sm:$0xff] %vm99, %v955
  %s958 = scalar_lea.vmem %s6, 176
  %959 = vst.msk [vmem:[%s958] sm:$0xff] %vm99, %v952
  %v960 = vmul.f32 %v923, 0.9
  %v961 = vadd.f32 %v960, %v58
  %v962 = vsub.f32 %v961, %v926
  %vm963 = vcmp.gt.f32.partialorder %v962, 1.0
  %v964 = vsel %vm963, 1, 0
  %v965 = vcvt.s32.f32 %v964
  %v967 = vsel %vm36, %v965, 0
  %969 = vmatpush.msra.mxu0 0.0
  %970 = vmatpush.msra.mxu0 0.0
  %971 = vmatpush.msra.mxu0 0.0
  %972 = vmatpush.msra.mxu0 0.0
  %973 = vmatpush.msra.mxu0 0.0
  %974 = vmatpush.msra.mxu0 0.0
  %975 = vmatpush.msra.mxu0 0.0
  %976 = vmatpush.msra.mxu0 0.0
  %977 = vmatpush.msra.mxu0 0.0
  %978 = vmatpush.msra.mxu0 0.0
  %979 = vmatpush.msra.mxu0 0.0
  %980 = vmatpush.msra.mxu0 0.0
  %981 = vmatpush.msra.mxu0 %v26
  %982 = vmatpush.msra.mxu0 %v25
  %983 = vmatpush.msra.mxu0 %v24
  %984 = vmatpush.msra.mxu0 %v23
  %985 = vmatmul.f32.gmra.mxu0 %v967
  %v986 = vpop.f32.mrf.mxu0
  %v987 = vadd.f32 %v69, %v986
  %988 = vdwg.mxu0
  %v989 = vmul.f32 %v952, 0.9
  %v990 = vadd.f32 %v989, %v987
  %v991 = vsub.f32 %v990, %v955
  %vm992 = vcmp.gt.f32.partialorder %v991, 1.0
  %v993 = vsel %vm992, 1, 0
  %v994 = vcvt.s32.f32 %v993
  %s995 = scalar_lea.vmem %s5, 184
  %996 = vst.msk [vmem:[%s995] sm:$0xff] %vm99, %v994
  %s997 = scalar_lea.vmem %s6, 184
  %998 = vst.msk [vmem:[%s997] sm:$0xff] %vm99, %v991
  %v999 = vmul.f32 %v962, 0.9
  %v1000 = vadd.f32 %v999, %v58
  %v1001 = vsub.f32 %v1000, %v965
  %vm1002 = vcmp.gt.f32.partialorder %v1001, 1.0
  %v1003 = vsel %vm1002, 1, 0
  %v1004 = vcvt.s32.f32 %v1003
  %v1006 = vsel %vm36, %v1004, 0
  %1008 = vmatpush.msra.mxu0 0.0
  %1009 = vmatpush.msra.mxu0 0.0
  %1010 = vmatpush.msra.mxu0 0.0
  %1011 = vmatpush.msra.mxu0 0.0
  %1012 = vmatpush.msra.mxu0 0.0
  %1013 = vmatpush.msra.mxu0 0.0
  %1014 = vmatpush.msra.mxu0 0.0
  %1015 = vmatpush.msra.mxu0 0.0
  %1016 = vmatpush.msra.mxu0 0.0
  %1017 = vmatpush.msra.mxu0 0.0
  %1018 = vmatpush.msra.mxu0 0.0
  %1019 = vmatpush.msra.mxu0 0.0
  %1020 = vmatpush.msra.mxu0 %v26
  %1021 = vmatpush.msra.mxu0 %v25
  %1022 = vmatpush.msra.mxu0 %v24
  %1023 = vmatpush.msra.mxu0 %v23
  %1024 = vmatmul.f32.gmra.mxu0 %v1006
  %v1025 = vpop.f32.mrf.mxu0
  %v1026 = vadd.f32 %v69, %v1025
  %1027 = vdwg.mxu0
  %v1028 = vmul.f32 %v991, 0.9
  %v1029 = vadd.f32 %v1028, %v1026
  %v1030 = vsub.f32 %v1029, %v994
  %vm1031 = vcmp.gt.f32.partialorder %v1030, 1.0
  %v1032 = vsel %vm1031, 1, 0
  %v1033 = vcvt.s32.f32 %v1032
  %s1034 = scalar_lea.vmem %s5, 192
  %1035 = vst.msk [vmem:[%s1034] sm:$0xff] %vm99, %v1033
  %s1036 = scalar_lea.vmem %s6, 192
  %1037 = vst.msk [vmem:[%s1036] sm:$0xff] %vm99, %v1030
  // Predicated region
  $region22: #{tpu_custom_call.1} parent=0 // pred_check
    _
  $region23: #{tpu_custom_call.1} parent=0 // pred_check_branch
    %1039 = sbr.rel (0) target = $region25
  $region24: #{tpu_custom_call.1} parent=0 // pred_region
    _
  $region25: #{tpu_custom_call.1} parent=0 // pred_fallthru
    _
  // Predicated region
  $region26: #{tpu_custom_call.1} parent=0 // pred_check
    _
  $region27: #{tpu_custom_call.1} parent=0 // pred_check_branch
    %1041 = sbr.rel (0) target = $region29
  $region28: #{tpu_custom_call.1} parent=0 // pred_region
    _
  $region29: #{tpu_custom_call.1} parent=0 // pred_fallthru
    _
  // Predicated region
  $region30: #{tpu_custom_call.1} parent=0 // pred_check
    _
  $region31: #{tpu_custom_call.1} parent=0 // pred_check_branch
    %1043 = sbr.rel (0) target = $region33
  $region32: #{tpu_custom_call.1} parent=0 // pred_region
    _
  $region33: #{tpu_custom_call.1} parent=0 // pred_fallthru
    _
  // Predicated region
  $region34: #{tpu_custom_call.1} parent=0 // pred_check
    _
  $region35: #{tpu_custom_call.1} parent=0 // pred_check_branch
    %1045 = sbr.rel (0) target = $region37
  $region36: #{tpu_custom_call.1} parent=0 // pred_region
    _
  $region37: #{tpu_custom_call.1} parent=0 // pred_fallthru
    _

</llo_original>
